<compile_context>
chip_gen: v6e
topology: v6e:2x2x1
jax: 0.10.0
libtpu: 0.0.40
codegen_flags: <defaults>
</compile_context>

<pallas_src>
import functools

import jax
import jax.numpy as jnp
from jax import lax
from jax.experimental import pallas as pl
from jax.experimental.pallas import tpu as pltpu


def _mish(x):
    # x * tanh(softplus(x)) with tanh(softplus(x)) = ((1+e^x)^2 - 1) / ((1+e^x)^2 + 1).
    # One EUP exp per element; approx reciprocal + one Newton step keeps ~f32 accuracy.
    # Clamp the exp argument at 20: beyond that tanh(softplus(x)) == 1 in f32 and
    # (1+e^x)^2 stays finite.
    xe = jnp.minimum(x, 20.0)
    e = jnp.exp(xe)
    n = e * (e + 2.0)                 # (1+e)^2 - 1   (>= 0)
    d = n + 2.0                       # (1+e)^2 + 1   (>= 2, never 0)
    r = pl.reciprocal(d, approx=True)
    r = r * (2.0 - d * r)             # one Newton refinement (VPU) -> ~f32 exact
    return x * (n * r)


def _ghostconv_kernel(x_ref, wd1_ref, b1_ref, wtap_ref, b2_ref, out_ref, *, C):
    # Lane-dense layout: last dim of every tile is W*C (w-major, channel-minor),
    # 128 lanes for the test shapes -> full-width VPU ops, unmasked stores.
    #
    # x_ref   : (TB, H, W*C)      input (C1 == C, see wrapper assert)
    # wd1_ref : (2C-1, 1, W*C)    cv1 1x1-conv weights per lane-roll diagonal
    #                             (BatchNorm scale pre-folded)
    # b1_ref  : (1, W*C)          cv1 folded BatchNorm bias
    # wtap_ref: (25, 1, W*C)      cv2 depthwise taps per lane (BN scale and W-boundary
    #                             pad=2 zero-mask pre-folded)
    # b2_ref  : (1, W*C)          cv2 folded BatchNorm bias
    # out_ref : (TB, 2, H, W*C)   [:,0] = cv1(x), [:,1] = cv2(cv1(x))
    TB, H, WC = x_ref.shape

    # ---- cv1: 1x1 conv as (2C-1) shifted-diagonal lane rolls + FMAs (VPU/XLU, f32).
    # For C1=C_=8 this beats an MXU matmul (K=N=8 uses <1% of the systolic array).
    x = x_ref[...].astype(jnp.float32)
    acc = jnp.zeros((TB, H, WC), jnp.float32)
    for di in range(2 * C - 1):
        d = di - (C - 1)                                   # d = c_out - c_in
        xr = x if d == 0 else pltpu.roll(x, shift=d % WC, axis=2)
        acc = acc + xr * wd1_ref[di]                       # (1, W*C) broadcasts
    y = _mish(acc + b1_ref[...])
    out_ref[:, 0, :, :] = y.astype(out_ref.dtype)          # first ghost half

    # ---- cv2: depthwise 5x5, pad=2, on y (which never leaves the kernel).
    # H shifts: slices of a zero-padded register value (no VMEM scratch, no zeroing).
    # W shifts: lane rolls by k*C (XLU); out-of-range columns contribute zero because
    # the boundary mask is folded into wtap, so there is no in-kernel masking.
    zrows = jnp.zeros((TB, 2, WC), jnp.float32)
    ypad = jnp.concatenate([zrows, y, zrows], axis=1)      # (TB, H+4, W*C)

    acc = jnp.zeros((TB, H, WC), jnp.float32)
    # Statically unrolled 25-tap loop: live set is ~a dozen vregs at these shapes.
    # For much larger H*W*C tiles, switch to lax.fori_loop(unroll=True) over the
    # flattened tap index to bound the accumulator live range.
    for dh in range(5):
        ysh = y if dh == 2 else ypad[:, dh:dh + H, :]
        for dw in range(5):
            t = dh * 5 + dw
            term = ysh if dw == 2 else pltpu.roll(ysh, shift=((2 - dw) * C) % WC, axis=2)
            acc = acc + term * wtap_ref[t]
    z = _mish(acc + b2_ref[...])
    out_ref[:, 1, :, :] = z.astype(out_ref.dtype)          # second ghost half


def ghostconv(x, w1, g1, be1, m1, v1, wdw, g2, be2, m2, v2, *, eps=1e-5, tb=None):
    """GhostConv.forward (inference-mode BatchNorm).

    x   : (B, C1, H, W)  NCHW, like PyTorch.
    w1  : (C_, C1, 1, 1) cv1 pointwise conv weight (torch layout).
    wdw : (C_, 1, 5, 5)  cv2 depthwise conv weight (torch layout).
    g/be/m/v : per-conv BatchNorm gamma/beta/running_mean/running_var, shape (C_,).
    Returns (B, 2*C_, H, W) == torch.cat([cv1(x), cv2(cv1(x))], dim=1).
    """
    B, C1, H, W = x.shape
    C = w1.shape[0]                         # c_ = c2 // 2
    # TODO(synk): c1 != c2//2 needs a block-diagonal MXU path for cv1.
    assert C1 == C, "shifted-diagonal cv1 path requires c1 == c2//2"
    WC = W * C

    if tb is None:
        # >= 2 grid steps whenever possible: keeps the pipeline alive and lets the
        # "parallel" batch axis shard across both TensorCores on v7x.
        tb = max(1, B // 2)
    assert B % tb == 0, "batch tile must divide batch"

    f32 = jnp.float32
    # ---- fold BatchNorm scale into the conv weights (one-time wrapper glue) ----
    inv1 = (g1 / jnp.sqrt(v1 + eps)).astype(f32)
    w1_eff = w1[:, :, 0, 0].astype(f32) * inv1[:, None]            # (C_out, C_in)
    b1 = (be1 - m1 * inv1).astype(f32)

    inv2 = (g2 / jnp.sqrt(v2 + eps)).astype(f32)
    wdw_eff = wdw[:, 0, :, :].astype(f32) * inv2[:, None, None]    # (C, 5, 5)
    b2 = (be2 - m2 * inv2).astype(f32)

    # cv1 weights per lane-roll diagonal d = c_out - c_in:
    #   wd1[d + C-1, w*C + c_out] = w1_eff[c_out, c_out - d]   (0 outside valid range)
    d_vals = jnp.arange(2 * C - 1) - (C - 1)                       # (2C-1,)
    c_out = jnp.arange(C)
    c_in = c_out[None, :] - d_vals[:, None]                        # (2C-1, C)
    valid = (c_in >= 0) & (c_in < C1)
    w_small = jnp.where(valid,
                        w1_eff[c_out[None, :], jnp.clip(c_in, 0, C1 - 1)],
                        0.0)                                       # (2C-1, C)
    wd1 = jnp.tile(w_small, (1, W)).reshape(2 * C - 1, 1, WC)
    b1_big = jnp.tile(b1, (W,)).reshape(1, WC)

    # cv2 taps per lane with the pad=2 W-boundary mask folded in:
    #   wtap[dh*5+dw, w*C + c] = wdw_eff[c, dh, dw] if 0 <= w+dw-2 < W else 0
    w_idx = jnp.arange(W)
    dw_idx = jnp.arange(5)
    wvalid = ((w_idx[None, :] + dw_idx[:, None] - 2 >= 0)
              & (w_idx[None, :] + dw_idx[:, None] - 2 < W)).astype(f32)      # (5, W)
    mask25 = jnp.tile(jnp.repeat(wvalid, C, axis=1), (5, 1))                 # (25, W*C)
    lane_w = jnp.tile(wdw_eff.transpose(1, 2, 0).reshape(25, C), (1, W))     # (25, W*C)
    wtap = (lane_w * mask25).reshape(25, 1, WC)
    b2_big = jnp.tile(b2, (W,)).reshape(1, WC)

    # channels-last, lane-collapsed input: (B, H, W*C1), w-major / channel-minor lanes
    x_ld = jnp.transpose(x, (0, 2, 3, 1)).reshape(B, H, W * C1)

    out = pl.pallas_call(
        functools.partial(_ghostconv_kernel, C=C),
        out_shape=jax.ShapeDtypeStruct((B, 2, H, WC), x.dtype),
        grid=(B // tb,),
        in_specs=[
            pl.BlockSpec((tb, H, WC), lambda b: (b, 0, 0)),
            pl.BlockSpec((2 * C - 1, 1, WC), lambda b: (0, 0, 0)),
            pl.BlockSpec((1, WC), lambda b: (0, 0)),
            pl.BlockSpec((25, 1, WC), lambda b: (0, 0, 0)),
            pl.BlockSpec((1, WC), lambda b: (0, 0)),
        ],
        out_specs=pl.BlockSpec((tb, 2, H, WC), lambda b: (b, 0, 0, 0)),
        compiler_params=pltpu.CompilerParams(
            dimension_semantics=("parallel",),
            # Tiny tiles (a few 10s of KiB double-buffered); explicit limit keeps the
            # pipeline double-buffered within the v7x 64 MiB / default-scoped budget.
            vmem_limit_bytes=32 * 1024 * 1024,
        ),
    )(x_ld, wd1, b1_big, wtap, b2_big)

    # torch.cat([y, cv2(y)], dim=1) in NCHW:
    # (B,2,H,W*C) -> (B,2,H,W,C) -> (B,2,C,H,W) -> (B,2C,H,W)
    return (out.reshape(B, 2, H, W, C)
               .transpose(0, 1, 4, 2, 3)
               .reshape(B, 2 * C, H, W))


def _ghostconv_ref(x, w1, g1, be1, m1, v1, wdw, g2, be2, m2, v2, eps=1e-5):
    """Pure-JAX reference mirroring the PyTorch GhostConv forward (inference BN)."""
    C_ = w1.shape[0]

    def bn(t, g, be, m, v):
        s = (g / jnp.sqrt(v + eps))[None, :, None, None]
        return (t - m[None, :, None, None]) * s + be[None, :, None, None]

    def mish(t):
        return t * jnp.tanh(jax.nn.softplus(t))

    y = lax.conv_general_dilated(
        x, w1, window_strides=(1, 1), padding="VALID",
        dimension_numbers=("NCHW", "OIHW", "NCHW"),
        precision=lax.Precision.HIGHEST)
    y = mish(bn(y, g1, be1, m1, v1))

    z = lax.conv_general_dilated(
        y, wdw, window_strides=(1, 1), padding=((2, 2), (2, 2)),
        dimension_numbers=("NCHW", "OIHW", "NCHW"),
        feature_group_count=C_,
        precision=lax.Precision.HIGHEST)
    z = mish(bn(z, g2, be2, m2, v2))
    return jnp.concatenate([y, z], axis=1)


if __name__ == "__main__":
    key = jax.random.PRNGKey(0)
    ks = jax.random.split(key, 12)

    # GhostConv(c1=8, c2=16, k=1, s=1, g=1, act=True) on a (2, 8, 16, 16) input.
    # W * C_ = 16 * 8 = 128 -> exactly one lane-dense vreg row.
    B, C1, C2, H, W = 2, 8, 16, 16, 16
    C_ = C2 // 2

    x = jax.random.normal(ks[0], (B, C1, H, W), dtype=jnp.float32)

    # cv1 parameters (pointwise conv + BN)
    w1 = 0.1 * jax.random.normal(ks[1], (C_, C1, 1, 1), dtype=jnp.float32)
    g1 = 1.0 + 0.1 * jax.random.normal(ks[2], (C_,), dtype=jnp.float32)
    be1 = 0.1 * jax.random.normal(ks[3], (C_,), dtype=jnp.float32)
    m1 = 0.1 * jax.random.normal(ks[4], (C_,), dtype=jnp.float32)
    v1 = jax.random.uniform(ks[5], (C_,), minval=0.5, maxval=1.5, dtype=jnp.float32)

    # cv2 parameters (5x5 depthwise conv + BN)
    wdw = 0.1 * jax.random.normal(ks[6], (C_, 1, 5, 5), dtype=jnp.float32)
    g2 = 1.0 + 0.1 * jax.random.normal(ks[7], (C_,), dtype=jnp.float32)
    be2 = 0.1 * jax.random.normal(ks[8], (C_,), dtype=jnp.float32)
    m2 = 0.1 * jax.random.normal(ks[9], (C_,), dtype=jnp.float32)
    v2 = jax.random.uniform(ks[10], (C_,), minval=0.5, maxval=1.5, dtype=jnp.float32)

    ghost = jax.jit(ghostconv)
    out = ghost(x, w1, g1, be1, m1, v1, wdw, g2, be2, m2, v2)
    out = jax.block_until_ready(out)

    ref = _ghostconv_ref(x, w1, g1, be1, m1, v1, wdw, g2, be2, m2, v2)
    ref = jax.block_until_ready(ref)

    assert out.shape == (B, C2, H, W), out.shape
    assert jnp.allclose(out, ref, atol=1e-3, rtol=1e-3), \
        float(jnp.max(jnp.abs(out - ref)))

    print("KERNEL_OK")
</pallas_src>

<mosaic_0001>
module attributes {stable_mosaic.version = 11 : i64} {
  func.func @_ghostconv_kernel(%arg0: i32, %arg1: memref<1x16x128xf32, #tpu.memory_space<vmem>>, %arg2: memref<15x1x128xf32, #tpu.memory_space<vmem>>, %arg3: memref<1x128xf32, #tpu.memory_space<vmem>>, %arg4: memref<25x1x128xf32, #tpu.memory_space<vmem>>, %arg5: memref<1x128xf32, #tpu.memory_space<vmem>>, %arg6: memref<1x2x16x128xf32, #tpu.memory_space<vmem>>) attributes {dimension_semantics = [#tpu.dimension_semantics<parallel>], iteration_bounds = array<i64: 2>, scalar_prefetch = 0 : i64, scratch_operands = 0 : i64, tpu.core_type = #tpu.core_type<tc>, window_params = [{transform_indices = @transform_0, window_bounds = array<i64: 1, 16, 128>}, {pipeline_mode = #tpu.pipeline_mode<synchronous>, transform_indices = @transform_1, window_bounds = array<i64: 15, 1, 128>}, {pipeline_mode = #tpu.pipeline_mode<synchronous>, transform_indices = @transform_2, window_bounds = array<i64: 1, 128>}, {pipeline_mode = #tpu.pipeline_mode<synchronous>, transform_indices = @transform_3, window_bounds = array<i64: 25, 1, 128>}, {pipeline_mode = #tpu.pipeline_mode<synchronous>, transform_indices = @transform_4, window_bounds = array<i64: 1, 128>}, {transform_indices = @transform_5, window_bounds = array<i64: 1, 2, 16, 128>}]} {
    %c0 = arith.constant 0 : index
    %c0_0 = arith.constant 0 : index
    %c0_1 = arith.constant 0 : index
    %0 = vector.load %arg1[%c0, %c0_0, %c0_1] : memref<1x16x128xf32, #tpu.memory_space<vmem>>, vector<1x16x128xf32>
    %cst = arith.constant 0.000000e+00 : f32
    %1 = vector.broadcast %cst : f32 to vector<1x16x128xf32>
    %c121_i32 = arith.constant 121 : i32
    %2 = tpu.dynamic_rotate %0 by %c121_i32 dim 2 : vector<1x16x128xf32>, i32 -> vector<1x16x128xf32>
    %c0_2 = arith.constant 0 : index
    %c0_3 = arith.constant 0 : index
    %c0_4 = arith.constant 0 : index
    %3 = vector.load %arg2[%c0_2, %c0_3, %c0_4] : memref<15x1x128xf32, #tpu.memory_space<vmem>>, vector<1x1x128xf32>
    %4 = vector.shape_cast %3 : vector<1x1x128xf32> to vector<1x128xf32>
    %5 = vector.shape_cast %4 : vector<1x128xf32> to vector<1x1x128xf32>
    %6 = vector.broadcast %5 : vector<1x1x128xf32> to vector<1x16x128xf32>
    %7 = arith.mulf %2, %6 : vector<1x16x128xf32>
    %8 = arith.addf %1, %7 : vector<1x16x128xf32>
    %c122_i32 = arith.constant 122 : i32
    %9 = tpu.dynamic_rotate %0 by %c122_i32 dim 2 : vector<1x16x128xf32>, i32 -> vector<1x16x128xf32>
    %c1 = arith.constant 1 : index
    %c0_5 = arith.constant 0 : index
    %c0_6 = arith.constant 0 : index
    %10 = vector.load %arg2[%c1, %c0_5, %c0_6] : memref<15x1x128xf32, #tpu.memory_space<vmem>>, vector<1x1x128xf32>
    %11 = vector.shape_cast %10 : vector<1x1x128xf32> to vector<1x128xf32>
    %12 = vector.shape_cast %11 : vector<1x128xf32> to vector<1x1x128xf32>
    %13 = vector.broadcast %12 : vector<1x1x128xf32> to vector<1x16x128xf32>
    %14 = arith.mulf %9, %13 : vector<1x16x128xf32>
    %15 = arith.addf %8, %14 : vector<1x16x128xf32>
    %c123_i32 = arith.constant 123 : i32
    %16 = tpu.dynamic_rotate %0 by %c123_i32 dim 2 : vector<1x16x128xf32>, i32 -> vector<1x16x128xf32>
    %c2 = arith.constant 2 : index
    %c0_7 = arith.constant 0 : index
    %c0_8 = arith.constant 0 : index
    %17 = vector.load %arg2[%c2, %c0_7, %c0_8] : memref<15x1x128xf32, #tpu.memory_space<vmem>>, vector<1x1x128xf32>
    %18 = vector.shape_cast %17 : vector<1x1x128xf32> to vector<1x128xf32>
    %19 = vector.shape_cast %18 : vector<1x128xf32> to vector<1x1x128xf32>
    %20 = vector.broadcast %19 : vector<1x1x128xf32> to vector<1x16x128xf32>
    %21 = arith.mulf %16, %20 : vector<1x16x128xf32>
    %22 = arith.addf %15, %21 : vector<1x16x128xf32>
    %c124_i32 = arith.constant 124 : i32
    %23 = tpu.dynamic_rotate %0 by %c124_i32 dim 2 : vector<1x16x128xf32>, i32 -> vector<1x16x128xf32>
    %c3 = arith.constant 3 : index
    %c0_9 = arith.constant 0 : index
    %c0_10 = arith.constant 0 : index
    %24 = vector.load %arg2[%c3, %c0_9, %c0_10] : memref<15x1x128xf32, #tpu.memory_space<vmem>>, vector<1x1x128xf32>
    %25 = vector.shape_cast %24 : vector<1x1x128xf32> to vector<1x128xf32>
    %26 = vector.shape_cast %25 : vector<1x128xf32> to vector<1x1x128xf32>
    %27 = vector.broadcast %26 : vector<1x1x128xf32> to vector<1x16x128xf32>
    %28 = arith.mulf %23, %27 : vector<1x16x128xf32>
    %29 = arith.addf %22, %28 : vector<1x16x128xf32>
    %c125_i32 = arith.constant 125 : i32
    %30 = tpu.dynamic_rotate %0 by %c125_i32 dim 2 : vector<1x16x128xf32>, i32 -> vector<1x16x128xf32>
    %c4 = arith.constant 4 : index
    %c0_11 = arith.constant 0 : index
    %c0_12 = arith.constant 0 : index
    %31 = vector.load %arg2[%c4, %c0_11, %c0_12] : memref<15x1x128xf32, #tpu.memory_space<vmem>>, vector<1x1x128xf32>
    %32 = vector.shape_cast %31 : vector<1x1x128xf32> to vector<1x128xf32>
    %33 = vector.shape_cast %32 : vector<1x128xf32> to vector<1x1x128xf32>
    %34 = vector.broadcast %33 : vector<1x1x128xf32> to vector<1x16x128xf32>
    %35 = arith.mulf %30, %34 : vector<1x16x128xf32>
    %36 = arith.addf %29, %35 : vector<1x16x128xf32>
    %c126_i32 = arith.constant 126 : i32
    %37 = tpu.dynamic_rotate %0 by %c126_i32 dim 2 : vector<1x16x128xf32>, i32 -> vector<1x16x128xf32>
    %c5 = arith.constant 5 : index
    %c0_13 = arith.constant 0 : index
    %c0_14 = arith.constant 0 : index
    %38 = vector.load %arg2[%c5, %c0_13, %c0_14] : memref<15x1x128xf32, #tpu.memory_space<vmem>>, vector<1x1x128xf32>
    %39 = vector.shape_cast %38 : vector<1x1x128xf32> to vector<1x128xf32>
    %40 = vector.shape_cast %39 : vector<1x128xf32> to vector<1x1x128xf32>
    %41 = vector.broadcast %40 : vector<1x1x128xf32> to vector<1x16x128xf32>
    %42 = arith.mulf %37, %41 : vector<1x16x128xf32>
    %43 = arith.addf %36, %42 : vector<1x16x128xf32>
    %c127_i32 = arith.constant 127 : i32
    %44 = tpu.dynamic_rotate %0 by %c127_i32 dim 2 : vector<1x16x128xf32>, i32 -> vector<1x16x128xf32>
    %c6 = arith.constant 6 : index
    %c0_15 = arith.constant 0 : index
    %c0_16 = arith.constant 0 : index
    %45 = vector.load %arg2[%c6, %c0_15, %c0_16] : memref<15x1x128xf32, #tpu.memory_space<vmem>>, vector<1x1x128xf32>
    %46 = vector.shape_cast %45 : vector<1x1x128xf32> to vector<1x128xf32>
    %47 = vector.shape_cast %46 : vector<1x128xf32> to vector<1x1x128xf32>
    %48 = vector.broadcast %47 : vector<1x1x128xf32> to vector<1x16x128xf32>
    %49 = arith.mulf %44, %48 : vector<1x16x128xf32>
    %50 = arith.addf %43, %49 : vector<1x16x128xf32>
    %c7 = arith.constant 7 : index
    %c0_17 = arith.constant 0 : index
    %c0_18 = arith.constant 0 : index
    %51 = vector.load %arg2[%c7, %c0_17, %c0_18] : memref<15x1x128xf32, #tpu.memory_space<vmem>>, vector<1x1x128xf32>
    %52 = vector.shape_cast %51 : vector<1x1x128xf32> to vector<1x128xf32>
    %53 = vector.shape_cast %52 : vector<1x128xf32> to vector<1x1x128xf32>
    %54 = vector.broadcast %53 : vector<1x1x128xf32> to vector<1x16x128xf32>
    %55 = arith.mulf %0, %54 : vector<1x16x128xf32>
    %56 = arith.addf %50, %55 : vector<1x16x128xf32>
    %c1_i32 = arith.constant 1 : i32
    %57 = tpu.dynamic_rotate %0 by %c1_i32 dim 2 : vector<1x16x128xf32>, i32 -> vector<1x16x128xf32>
    %c8 = arith.constant 8 : index
    %c0_19 = arith.constant 0 : index
    %c0_20 = arith.constant 0 : index
    %58 = vector.load %arg2[%c8, %c0_19, %c0_20] : memref<15x1x128xf32, #tpu.memory_space<vmem>>, vector<1x1x128xf32>
    %59 = vector.shape_cast %58 : vector<1x1x128xf32> to vector<1x128xf32>
    %60 = vector.shape_cast %59 : vector<1x128xf32> to vector<1x1x128xf32>
    %61 = vector.broadcast %60 : vector<1x1x128xf32> to vector<1x16x128xf32>
    %62 = arith.mulf %57, %61 : vector<1x16x128xf32>
    %63 = arith.addf %56, %62 : vector<1x16x128xf32>
    %c2_i32 = arith.constant 2 : i32
    %64 = tpu.dynamic_rotate %0 by %c2_i32 dim 2 : vector<1x16x128xf32>, i32 -> vector<1x16x128xf32>
    %c9 = arith.constant 9 : index
    %c0_21 = arith.constant 0 : index
    %c0_22 = arith.constant 0 : index
    %65 = vector.load %arg2[%c9, %c0_21, %c0_22] : memref<15x1x128xf32, #tpu.memory_space<vmem>>, vector<1x1x128xf32>
    %66 = vector.shape_cast %65 : vector<1x1x128xf32> to vector<1x128xf32>
    %67 = vector.shape_cast %66 : vector<1x128xf32> to vector<1x1x128xf32>
    %68 = vector.broadcast %67 : vector<1x1x128xf32> to vector<1x16x128xf32>
    %69 = arith.mulf %64, %68 : vector<1x16x128xf32>
    %70 = arith.addf %63, %69 : vector<1x16x128xf32>
    %c3_i32 = arith.constant 3 : i32
    %71 = tpu.dynamic_rotate %0 by %c3_i32 dim 2 : vector<1x16x128xf32>, i32 -> vector<1x16x128xf32>
    %c10 = arith.constant 10 : index
    %c0_23 = arith.constant 0 : index
    %c0_24 = arith.constant 0 : index
    %72 = vector.load %arg2[%c10, %c0_23, %c0_24] : memref<15x1x128xf32, #tpu.memory_space<vmem>>, vector<1x1x128xf32>
    %73 = vector.shape_cast %72 : vector<1x1x128xf32> to vector<1x128xf32>
    %74 = vector.shape_cast %73 : vector<1x128xf32> to vector<1x1x128xf32>
    %75 = vector.broadcast %74 : vector<1x1x128xf32> to vector<1x16x128xf32>
    %76 = arith.mulf %71, %75 : vector<1x16x128xf32>
    %77 = arith.addf %70, %76 : vector<1x16x128xf32>
    %c4_i32 = arith.constant 4 : i32
    %78 = tpu.dynamic_rotate %0 by %c4_i32 dim 2 : vector<1x16x128xf32>, i32 -> vector<1x16x128xf32>
    %c11 = arith.constant 11 : index
    %c0_25 = arith.constant 0 : index
    %c0_26 = arith.constant 0 : index
    %79 = vector.load %arg2[%c11, %c0_25, %c0_26] : memref<15x1x128xf32, #tpu.memory_space<vmem>>, vector<1x1x128xf32>
    %80 = vector.shape_cast %79 : vector<1x1x128xf32> to vector<1x128xf32>
    %81 = vector.shape_cast %80 : vector<1x128xf32> to vector<1x1x128xf32>
    %82 = vector.broadcast %81 : vector<1x1x128xf32> to vector<1x16x128xf32>
    %83 = arith.mulf %78, %82 : vector<1x16x128xf32>
    %84 = arith.addf %77, %83 : vector<1x16x128xf32>
    %c5_i32 = arith.constant 5 : i32
    %85 = tpu.dynamic_rotate %0 by %c5_i32 dim 2 : vector<1x16x128xf32>, i32 -> vector<1x16x128xf32>
    %c12 = arith.constant 12 : index
    %c0_27 = arith.constant 0 : index
    %c0_28 = arith.constant 0 : index
    %86 = vector.load %arg2[%c12, %c0_27, %c0_28] : memref<15x1x128xf32, #tpu.memory_space<vmem>>, vector<1x1x128xf32>
    %87 = vector.shape_cast %86 : vector<1x1x128xf32> to vector<1x128xf32>
    %88 = vector.shape_cast %87 : vector<1x128xf32> to vector<1x1x128xf32>
    %89 = vector.broadcast %88 : vector<1x1x128xf32> to vector<1x16x128xf32>
    %90 = arith.mulf %85, %89 : vector<1x16x128xf32>
    %91 = arith.addf %84, %90 : vector<1x16x128xf32>
    %c6_i32 = arith.constant 6 : i32
    %92 = tpu.dynamic_rotate %0 by %c6_i32 dim 2 : vector<1x16x128xf32>, i32 -> vector<1x16x128xf32>
    %c13 = arith.constant 13 : index
    %c0_29 = arith.constant 0 : index
    %c0_30 = arith.constant 0 : index
    %93 = vector.load %arg2[%c13, %c0_29, %c0_30] : memref<15x1x128xf32, #tpu.memory_space<vmem>>, vector<1x1x128xf32>
    %94 = vector.shape_cast %93 : vector<1x1x128xf32> to vector<1x128xf32>
    %95 = vector.shape_cast %94 : vector<1x128xf32> to vector<1x1x128xf32>
    %96 = vector.broadcast %95 : vector<1x1x128xf32> to vector<1x16x128xf32>
    %97 = arith.mulf %92, %96 : vector<1x16x128xf32>
    %98 = arith.addf %91, %97 : vector<1x16x128xf32>
    %c7_i32 = arith.constant 7 : i32
    %99 = tpu.dynamic_rotate %0 by %c7_i32 dim 2 : vector<1x16x128xf32>, i32 -> vector<1x16x128xf32>
    %c14 = arith.constant 14 : index
    %c0_31 = arith.constant 0 : index
    %c0_32 = arith.constant 0 : index
    %100 = vector.load %arg2[%c14, %c0_31, %c0_32] : memref<15x1x128xf32, #tpu.memory_space<vmem>>, vector<1x1x128xf32>
    %101 = vector.shape_cast %100 : vector<1x1x128xf32> to vector<1x128xf32>
    %102 = vector.shape_cast %101 : vector<1x128xf32> to vector<1x1x128xf32>
    %103 = vector.broadcast %102 : vector<1x1x128xf32> to vector<1x16x128xf32>
    %104 = arith.mulf %99, %103 : vector<1x16x128xf32>
    %105 = arith.addf %98, %104 : vector<1x16x128xf32>
    %c0_33 = arith.constant 0 : index
    %c0_34 = arith.constant 0 : index
    %106 = vector.load %arg3[%c0_33, %c0_34] : memref<1x128xf32, #tpu.memory_space<vmem>>, vector<1x128xf32>
    %107 = vector.shape_cast %106 : vector<1x128xf32> to vector<1x1x128xf32>
    %108 = vector.broadcast %107 : vector<1x1x128xf32> to vector<1x16x128xf32>
    %109 = arith.addf %105, %108 : vector<1x16x128xf32>
    %cst_35 = arith.constant 2.000000e+01 : f32
    %110 = vector.broadcast %cst_35 : f32 to vector<1x16x128xf32>
    %111 = arith.minimumf %109, %110 : vector<1x16x128xf32>
    %112 = math.exp %111 : vector<1x16x128xf32>
    %cst_36 = arith.constant 2.000000e+00 : f32
    %113 = vector.broadcast %cst_36 : f32 to vector<1x16x128xf32>
    %114 = arith.addf %112, %113 : vector<1x16x128xf32>
    %115 = arith.mulf %112, %114 : vector<1x16x128xf32>
    %cst_37 = arith.constant 2.000000e+00 : f32
    %116 = vector.broadcast %cst_37 : f32 to vector<1x16x128xf32>
    %117 = arith.addf %115, %116 : vector<1x16x128xf32>
    %118 = tpu.reciprocal %117 {approx = true} : vector<1x16x128xf32> -> vector<1x16x128xf32>
    %119 = arith.mulf %117, %118 : vector<1x16x128xf32>
    %cst_38 = arith.constant 2.000000e+00 : f32
    %120 = vector.broadcast %cst_38 : f32 to vector<1x16x128xf32>
    %121 = arith.subf %120, %119 : vector<1x16x128xf32>
    %122 = arith.mulf %118, %121 : vector<1x16x128xf32>
    %123 = arith.mulf %115, %122 : vector<1x16x128xf32>
    %124 = arith.mulf %109, %123 : vector<1x16x128xf32>
    %c0_39 = arith.constant 0 : index
    %c0_40 = arith.constant 0 : index
    %c0_41 = arith.constant 0 : index
    %c0_42 = arith.constant 0 : index
    %125 = vector.load %arg6[%c0_39, %c0_40, %c0_41, %c0_42] : memref<1x2x16x128xf32, #tpu.memory_space<vmem>>, vector<1x1x16x128xf32>
    %126 = vector.shape_cast %125 : vector<1x1x16x128xf32> to vector<1x16x128xf32>
    %127 = vector.shape_cast %124 : vector<1x16x128xf32> to vector<1x1x16x128xf32>
    tpu.vector_store %arg6[%c0_39, %c0_40, %c0_41, %c0_42], %127 {strides = array<i32>} : memref<1x2x16x128xf32, #tpu.memory_space<vmem>>, vector<1x1x16x128xf32>,
    %cst_43 = arith.constant 0.000000e+00 : f32
    %128 = vector.broadcast %cst_43 : f32 to vector<1x2x128xf32>
    %129 = tpu.concatenate %128, %124, %128 in 1 : vector<1x2x128xf32>, vector<1x16x128xf32>, vector<1x2x128xf32> -> vector<1x20x128xf32>
    %cst_44 = arith.constant 0.000000e+00 : f32
    %130 = vector.broadcast %cst_44 : f32 to vector<1x16x128xf32>
    %131 = vector.extract_strided_slice %129 {offsets = [0, 0, 0], sizes = [1, 16, 128], strides = [1, 1, 1]} : vector<1x20x128xf32> to vector<1x16x128xf32>
    %c16_i32 = arith.constant 16 : i32
    %132 = tpu.dynamic_rotate %131 by %c16_i32 dim 2 : vector<1x16x128xf32>, i32 -> vector<1x16x128xf32>
    %c0_45 = arith.constant 0 : index
    %c0_46 = arith.constant 0 : index
    %c0_47 = arith.constant 0 : index
    %133 = vector.load %arg4[%c0_45, %c0_46, %c0_47] : memref<25x1x128xf32, #tpu.memory_space<vmem>>, vector<1x1x128xf32>
    %134 = vector.shape_cast %133 : vector<1x1x128xf32> to vector<1x128xf32>
    %135 = vector.shape_cast %134 : vector<1x128xf32> to vector<1x1x128xf32>
    %136 = vector.broadcast %135 : vector<1x1x128xf32> to vector<1x16x128xf32>
    %137 = arith.mulf %132, %136 : vector<1x16x128xf32>
    %138 = arith.addf %130, %137 : vector<1x16x128xf32>
    %c8_i32 = arith.constant 8 : i32
    %139 = tpu.dynamic_rotate %131 by %c8_i32 dim 2 : vector<1x16x128xf32>, i32 -> vector<1x16x128xf32>
    %c1_48 = arith.constant 1 : index
    %c0_49 = arith.constant 0 : index
    %c0_50 = arith.constant 0 : index
    %140 = vector.load %arg4[%c1_48, %c0_49, %c0_50] : memref<25x1x128xf32, #tpu.memory_space<vmem>>, vector<1x1x128xf32>
    %141 = vector.shape_cast %140 : vector<1x1x128xf32> to vector<1x128xf32>
    %142 = vector.shape_cast %141 : vector<1x128xf32> to vector<1x1x128xf32>
    %143 = vector.broadcast %142 : vector<1x1x128xf32> to vector<1x16x128xf32>
    %144 = arith.mulf %139, %143 : vector<1x16x128xf32>
    %145 = arith.addf %138, %144 : vector<1x16x128xf32>
    %c2_51 = arith.constant 2 : index
    %c0_52 = arith.constant 0 : index
    %c0_53 = arith.constant 0 : index
    %146 = vector.load %arg4[%c2_51, %c0_52, %c0_53] : memref<25x1x128xf32, #tpu.memory_space<vmem>>, vector<1x1x128xf32>
    %147 = vector.shape_cast %146 : vector<1x1x128xf32> to vector<1x128xf32>
    %148 = vector.shape_cast %147 : vector<1x128xf32> to vector<1x1x128xf32>
    %149 = vector.broadcast %148 : vector<1x1x128xf32> to vector<1x16x128xf32>
    %150 = arith.mulf %131, %149 : vector<1x16x128xf32>
    %151 = arith.addf %145, %150 : vector<1x16x128xf32>
    %c120_i32 = arith.constant 120 : i32
    %152 = tpu.dynamic_rotate %131 by %c120_i32 dim 2 : vector<1x16x128xf32>, i32 -> vector<1x16x128xf32>
    %c3_54 = arith.constant 3 : index
    %c0_55 = arith.constant 0 : index
    %c0_56 = arith.constant 0 : index
    %153 = vector.load %arg4[%c3_54, %c0_55, %c0_56] : memref<25x1x128xf32, #tpu.memory_space<vmem>>, vector<1x1x128xf32>
    %154 = vector.shape_cast %153 : vector<1x1x128xf32> to vector<1x128xf32>
    %155 = vector.shape_cast %154 : vector<1x128xf32> to vector<1x1x128xf32>
    %156 = vector.broadcast %155 : vector<1x1x128xf32> to vector<1x16x128xf32>
    %157 = arith.mulf %152, %156 : vector<1x16x128xf32>
    %158 = arith.addf %151, %157 : vector<1x16x128xf32>
    %c112_i32 = arith.constant 112 : i32
    %159 = tpu.dynamic_rotate %131 by %c112_i32 dim 2 : vector<1x16x128xf32>, i32 -> vector<1x16x128xf32>
    %c4_57 = arith.constant 4 : index
    %c0_58 = arith.constant 0 : index
    %c0_59 = arith.constant 0 : index
    %160 = vector.load %arg4[%c4_57, %c0_58, %c0_59] : memref<25x1x128xf32, #tpu.memory_space<vmem>>, vector<1x1x128xf32>
    %161 = vector.shape_cast %160 : vector<1x1x128xf32> to vector<1x128xf32>
    %162 = vector.shape_cast %161 : vector<1x128xf32> to vector<1x1x128xf32>
    %163 = vector.broadcast %162 : vector<1x1x128xf32> to vector<1x16x128xf32>
    %164 = arith.mulf %159, %163 : vector<1x16x128xf32>
    %165 = arith.addf %158, %164 : vector<1x16x128xf32>
    %166 = vector.extract_strided_slice %129 {offsets = [0, 1, 0], sizes = [1, 16, 128], strides = [1, 1, 1]} : vector<1x20x128xf32> to vector<1x16x128xf32>
    %c16_i32_60 = arith.constant 16 : i32
    %167 = tpu.dynamic_rotate %166 by %c16_i32_60 dim 2 : vector<1x16x128xf32>, i32 -> vector<1x16x128xf32>
    %c5_61 = arith.constant 5 : index
    %c0_62 = arith.constant 0 : index
    %c0_63 = arith.constant 0 : index
    %168 = vector.load %arg4[%c5_61, %c0_62, %c0_63] : memref<25x1x128xf32, #tpu.memory_space<vmem>>, vector<1x1x128xf32>
    %169 = vector.shape_cast %168 : vector<1x1x128xf32> to vector<1x128xf32>
    %170 = vector.shape_cast %169 : vector<1x128xf32> to vector<1x1x128xf32>
    %171 = vector.broadcast %170 : vector<1x1x128xf32> to vector<1x16x128xf32>
    %172 = arith.mulf %167, %171 : vector<1x16x128xf32>
    %173 = arith.addf %165, %172 : vector<1x16x128xf32>
    %c8_i32_64 = arith.constant 8 : i32
    %174 = tpu.dynamic_rotate %166 by %c8_i32_64 dim 2 : vector<1x16x128xf32>, i32 -> vector<1x16x128xf32>
    %c6_65 = arith.constant 6 : index
    %c0_66 = arith.constant 0 : index
    %c0_67 = arith.constant 0 : index
    %175 = vector.load %arg4[%c6_65, %c0_66, %c0_67] : memref<25x1x128xf32, #tpu.memory_space<vmem>>, vector<1x1x128xf32>
    %176 = vector.shape_cast %175 : vector<1x1x128xf32> to vector<1x128xf32>
    %177 = vector.shape_cast %176 : vector<1x128xf32> to vector<1x1x128xf32>
    %178 = vector.broadcast %177 : vector<1x1x128xf32> to vector<1x16x128xf32>
    %179 = arith.mulf %174, %178 : vector<1x16x128xf32>
    %180 = arith.addf %173, %179 : vector<1x16x128xf32>
    %c7_68 = arith.constant 7 : index
    %c0_69 = arith.constant 0 : index
    %c0_70 = arith.constant 0 : index
    %181 = vector.load %arg4[%c7_68, %c0_69, %c0_70] : memref<25x1x128xf32, #tpu.memory_space<vmem>>, vector<1x1x128xf32>
    %182 = vector.shape_cast %181 : vector<1x1x128xf32> to vector<1x128xf32>
    %183 = vector.shape_cast %182 : vector<1x128xf32> to vector<1x1x128xf32>
    %184 = vector.broadcast %183 : vector<1x1x128xf32> to vector<1x16x128xf32>
    %185 = arith.mulf %166, %184 : vector<1x16x128xf32>
    %186 = arith.addf %180, %185 : vector<1x16x128xf32>
    %c120_i32_71 = arith.constant 120 : i32
    %187 = tpu.dynamic_rotate %166 by %c120_i32_71 dim 2 : vector<1x16x128xf32>, i32 -> vector<1x16x128xf32>
    %c8_72 = arith.constant 8 : index
    %c0_73 = arith.constant 0 : index
    %c0_74 = arith.constant 0 : index
    %188 = vector.load %arg4[%c8_72, %c0_73, %c0_74] : memref<25x1x128xf32, #tpu.memory_space<vmem>>, vector<1x1x128xf32>
    %189 = vector.shape_cast %188 : vector<1x1x128xf32> to vector<1x128xf32>
    %190 = vector.shape_cast %189 : vector<1x128xf32> to vector<1x1x128xf32>
    %191 = vector.broadcast %190 : vector<1x1x128xf32> to vector<1x16x128xf32>
    %192 = arith.mulf %187, %191 : vector<1x16x128xf32>
    %193 = arith.addf %186, %192 : vector<1x16x128xf32>
    %c112_i32_75 = arith.constant 112 : i32
    %194 = tpu.dynamic_rotate %166 by %c112_i32_75 dim 2 : vector<1x16x128xf32>, i32 -> vector<1x16x128xf32>
    %c9_76 = arith.constant 9 : index
    %c0_77 = arith.constant 0 : index
    %c0_78 = arith.constant 0 : index
    %195 = vector.load %arg4[%c9_76, %c0_77, %c0_78] : memref<25x1x128xf32, #tpu.memory_space<vmem>>, vector<1x1x128xf32>
    %196 = vector.shape_cast %195 : vector<1x1x128xf32> to vector<1x128xf32>
    %197 = vector.shape_cast %196 : vector<1x128xf32> to vector<1x1x128xf32>
    %198 = vector.broadcast %197 : vector<1x1x128xf32> to vector<1x16x128xf32>
    %199 = arith.mulf %194, %198 : vector<1x16x128xf32>
    %200 = arith.addf %193, %199 : vector<1x16x128xf32>
    %c16_i32_79 = arith.constant 16 : i32
    %201 = tpu.dynamic_rotate %124 by %c16_i32_79 dim 2 : vector<1x16x128xf32>, i32 -> vector<1x16x128xf32>
    %c10_80 = arith.constant 10 : index
    %c0_81 = arith.constant 0 : index
    %c0_82 = arith.constant 0 : index
    %202 = vector.load %arg4[%c10_80, %c0_81, %c0_82] : memref<25x1x128xf32, #tpu.memory_space<vmem>>, vector<1x1x128xf32>
    %203 = vector.shape_cast %202 : vector<1x1x128xf32> to vector<1x128xf32>
    %204 = vector.shape_cast %203 : vector<1x128xf32> to vector<1x1x128xf32>
    %205 = vector.broadcast %204 : vector<1x1x128xf32> to vector<1x16x128xf32>
    %206 = arith.mulf %201, %205 : vector<1x16x128xf32>
    %207 = arith.addf %200, %206 : vector<1x16x128xf32>
    %c8_i32_83 = arith.constant 8 : i32
    %208 = tpu.dynamic_rotate %124 by %c8_i32_83 dim 2 : vector<1x16x128xf32>, i32 -> vector<1x16x128xf32>
    %c11_84 = arith.constant 11 : index
    %c0_85 = arith.constant 0 : index
    %c0_86 = arith.constant 0 : index
    %209 = vector.load %arg4[%c11_84, %c0_85, %c0_86] : memref<25x1x128xf32, #tpu.memory_space<vmem>>, vector<1x1x128xf32>
    %210 = vector.shape_cast %209 : vector<1x1x128xf32> to vector<1x128xf32>
    %211 = vector.shape_cast %210 : vector<1x128xf32> to vector<1x1x128xf32>
    %212 = vector.broadcast %211 : vector<1x1x128xf32> to vector<1x16x128xf32>
    %213 = arith.mulf %208, %212 : vector<1x16x128xf32>
    %214 = arith.addf %207, %213 : vector<1x16x128xf32>
    %c12_87 = arith.constant 12 : index
    %c0_88 = arith.constant 0 : index
    %c0_89 = arith.constant 0 : index
    %215 = vector.load %arg4[%c12_87, %c0_88, %c0_89] : memref<25x1x128xf32, #tpu.memory_space<vmem>>, vector<1x1x128xf32>
    %216 = vector.shape_cast %215 : vector<1x1x128xf32> to vector<1x128xf32>
    %217 = vector.shape_cast %216 : vector<1x128xf32> to vector<1x1x128xf32>
    %218 = vector.broadcast %217 : vector<1x1x128xf32> to vector<1x16x128xf32>
    %219 = arith.mulf %124, %218 : vector<1x16x128xf32>
    %220 = arith.addf %214, %219 : vector<1x16x128xf32>
    %c120_i32_90 = arith.constant 120 : i32
    %221 = tpu.dynamic_rotate %124 by %c120_i32_90 dim 2 : vector<1x16x128xf32>, i32 -> vector<1x16x128xf32>
    %c13_91 = arith.constant 13 : index
    %c0_92 = arith.constant 0 : index
    %c0_93 = arith.constant 0 : index
    %222 = vector.load %arg4[%c13_91, %c0_92, %c0_93] : memref<25x1x128xf32, #tpu.memory_space<vmem>>, vector<1x1x128xf32>
    %223 = vector.shape_cast %222 : vector<1x1x128xf32> to vector<1x128xf32>
    %224 = vector.shape_cast %223 : vector<1x128xf32> to vector<1x1x128xf32>
    %225 = vector.broadcast %224 : vector<1x1x128xf32> to vector<1x16x128xf32>
    %226 = arith.mulf %221, %225 : vector<1x16x128xf32>
    %227 = arith.addf %220, %226 : vector<1x16x128xf32>
    %c112_i32_94 = arith.constant 112 : i32
    %228 = tpu.dynamic_rotate %124 by %c112_i32_94 dim 2 : vector<1x16x128xf32>, i32 -> vector<1x16x128xf32>
    %c14_95 = arith.constant 14 : index
    %c0_96 = arith.constant 0 : index
    %c0_97 = arith.constant 0 : index
    %229 = vector.load %arg4[%c14_95, %c0_96, %c0_97] : memref<25x1x128xf32, #tpu.memory_space<vmem>>, vector<1x1x128xf32>
    %230 = vector.shape_cast %229 : vector<1x1x128xf32> to vector<1x128xf32>
    %231 = vector.shape_cast %230 : vector<1x128xf32> to vector<1x1x128xf32>
    %232 = vector.broadcast %231 : vector<1x1x128xf32> to vector<1x16x128xf32>
    %233 = arith.mulf %228, %232 : vector<1x16x128xf32>
    %234 = arith.addf %227, %233 : vector<1x16x128xf32>
    %235 = vector.extract_strided_slice %129 {offsets = [0, 3, 0], sizes = [1, 16, 128], strides = [1, 1, 1]} : vector<1x20x128xf32> to vector<1x16x128xf32>
    %c16_i32_98 = arith.constant 16 : i32
    %236 = tpu.dynamic_rotate %235 by %c16_i32_98 dim 2 : vector<1x16x128xf32>, i32 -> vector<1x16x128xf32>
    %c15 = arith.constant 15 : index
    %c0_99 = arith.constant 0 : index
    %c0_100 = arith.constant 0 : index
    %237 = vector.load %arg4[%c15, %c0_99, %c0_100] : memref<25x1x128xf32, #tpu.memory_space<vmem>>, vector<1x1x128xf32>
    %238 = vector.shape_cast %237 : vector<1x1x128xf32> to vector<1x128xf32>
    %239 = vector.shape_cast %238 : vector<1x128xf32> to vector<1x1x128xf32>
    %240 = vector.broadcast %239 : vector<1x1x128xf32> to vector<1x16x128xf32>
    %241 = arith.mulf %236, %240 : vector<1x16x128xf32>
    %242 = arith.addf %234, %241 : vector<1x16x128xf32>
    %c8_i32_101 = arith.constant 8 : i32
    %243 = tpu.dynamic_rotate %235 by %c8_i32_101 dim 2 : vector<1x16x128xf32>, i32 -> vector<1x16x128xf32>
    %c16 = arith.constant 16 : index
    %c0_102 = arith.constant 0 : index
    %c0_103 = arith.constant 0 : index
    %244 = vector.load %arg4[%c16, %c0_102, %c0_103] : memref<25x1x128xf32, #tpu.memory_space<vmem>>, vector<1x1x128xf32>
    %245 = vector.shape_cast %244 : vector<1x1x128xf32> to vector<1x128xf32>
    %246 = vector.shape_cast %245 : vector<1x128xf32> to vector<1x1x128xf32>
    %247 = vector.broadcast %246 : vector<1x1x128xf32> to vector<1x16x128xf32>
    %248 = arith.mulf %243, %247 : vector<1x16x128xf32>
    %249 = arith.addf %242, %248 : vector<1x16x128xf32>
    %c17 = arith.constant 17 : index
    %c0_104 = arith.constant 0 : index
    %c0_105 = arith.constant 0 : index
    %250 = vector.load %arg4[%c17, %c0_104, %c0_105] : memref<25x1x128xf32, #tpu.memory_space<vmem>>, vector<1x1x128xf32>
    %251 = vector.shape_cast %250 : vector<1x1x128xf32> to vector<1x128xf32>
    %252 = vector.shape_cast %251 : vector<1x128xf32> to vector<1x1x128xf32>
    %253 = vector.broadcast %252 : vector<1x1x128xf32> to vector<1x16x128xf32>
    %254 = arith.mulf %235, %253 : vector<1x16x128xf32>
    %255 = arith.addf %249, %254 : vector<1x16x128xf32>
    %c120_i32_106 = arith.constant 120 : i32
    %256 = tpu.dynamic_rotate %235 by %c120_i32_106 dim 2 : vector<1x16x128xf32>, i32 -> vector<1x16x128xf32>
    %c18 = arith.constant 18 : index
    %c0_107 = arith.constant 0 : index
    %c0_108 = arith.constant 0 : index
    %257 = vector.load %arg4[%c18, %c0_107, %c0_108] : memref<25x1x128xf32, #tpu.memory_space<vmem>>, vector<1x1x128xf32>
    %258 = vector.shape_cast %257 : vector<1x1x128xf32> to vector<1x128xf32>
    %259 = vector.shape_cast %258 : vector<1x128xf32> to vector<1x1x128xf32>
    %260 = vector.broadcast %259 : vector<1x1x128xf32> to vector<1x16x128xf32>
    %261 = arith.mulf %256, %260 : vector<1x16x128xf32>
    %262 = arith.addf %255, %261 : vector<1x16x128xf32>
    %c112_i32_109 = arith.constant 112 : i32
    %263 = tpu.dynamic_rotate %235 by %c112_i32_109 dim 2 : vector<1x16x128xf32>, i32 -> vector<1x16x128xf32>
    %c19 = arith.constant 19 : index
    %c0_110 = arith.constant 0 : index
    %c0_111 = arith.constant 0 : index
    %264 = vector.load %arg4[%c19, %c0_110, %c0_111] : memref<25x1x128xf32, #tpu.memory_space<vmem>>, vector<1x1x128xf32>
    %265 = vector.shape_cast %264 : vector<1x1x128xf32> to vector<1x128xf32>
    %266 = vector.shape_cast %265 : vector<1x128xf32> to vector<1x1x128xf32>
    %267 = vector.broadcast %266 : vector<1x1x128xf32> to vector<1x16x128xf32>
    %268 = arith.mulf %263, %267 : vector<1x16x128xf32>
    %269 = arith.addf %262, %268 : vector<1x16x128xf32>
    %270 = vector.extract_strided_slice %129 {offsets = [0, 4, 0], sizes = [1, 16, 128], strides = [1, 1, 1]} : vector<1x20x128xf32> to vector<1x16x128xf32>
    %c16_i32_112 = arith.constant 16 : i32
    %271 = tpu.dynamic_rotate %270 by %c16_i32_112 dim 2 : vector<1x16x128xf32>, i32 -> vector<1x16x128xf32>
    %c20 = arith.constant 20 : index
    %c0_113 = arith.constant 0 : index
    %c0_114 = arith.constant 0 : index
    %272 = vector.load %arg4[%c20, %c0_113, %c0_114] : memref<25x1x128xf32, #tpu.memory_space<vmem>>, vector<1x1x128xf32>
    %273 = vector.shape_cast %272 : vector<1x1x128xf32> to vector<1x128xf32>
    %274 = vector.shape_cast %273 : vector<1x128xf32> to vector<1x1x128xf32>
    %275 = vector.broadcast %274 : vector<1x1x128xf32> to vector<1x16x128xf32>
    %276 = arith.mulf %271, %275 : vector<1x16x128xf32>
    %277 = arith.addf %269, %276 : vector<1x16x128xf32>
    %c8_i32_115 = arith.constant 8 : i32
    %278 = tpu.dynamic_rotate %270 by %c8_i32_115 dim 2 : vector<1x16x128xf32>, i32 -> vector<1x16x128xf32>
    %c21 = arith.constant 21 : index
    %c0_116 = arith.constant 0 : index
    %c0_117 = arith.constant 0 : index
    %279 = vector.load %arg4[%c21, %c0_116, %c0_117] : memref<25x1x128xf32, #tpu.memory_space<vmem>>, vector<1x1x128xf32>
    %280 = vector.shape_cast %279 : vector<1x1x128xf32> to vector<1x128xf32>
    %281 = vector.shape_cast %280 : vector<1x128xf32> to vector<1x1x128xf32>
    %282 = vector.broadcast %281 : vector<1x1x128xf32> to vector<1x16x128xf32>
    %283 = arith.mulf %278, %282 : vector<1x16x128xf32>
    %284 = arith.addf %277, %283 : vector<1x16x128xf32>
    %c22 = arith.constant 22 : index
    %c0_118 = arith.constant 0 : index
    %c0_119 = arith.constant 0 : index
    %285 = vector.load %arg4[%c22, %c0_118, %c0_119] : memref<25x1x128xf32, #tpu.memory_space<vmem>>, vector<1x1x128xf32>
    %286 = vector.shape_cast %285 : vector<1x1x128xf32> to vector<1x128xf32>
    %287 = vector.shape_cast %286 : vector<1x128xf32> to vector<1x1x128xf32>
    %288 = vector.broadcast %287 : vector<1x1x128xf32> to vector<1x16x128xf32>
    %289 = arith.mulf %270, %288 : vector<1x16x128xf32>
    %290 = arith.addf %284, %289 : vector<1x16x128xf32>
    %c120_i32_120 = arith.constant 120 : i32
    %291 = tpu.dynamic_rotate %270 by %c120_i32_120 dim 2 : vector<1x16x128xf32>, i32 -> vector<1x16x128xf32>
    %c23 = arith.constant 23 : index
    %c0_121 = arith.constant 0 : index
    %c0_122 = arith.constant 0 : index
    %292 = vector.load %arg4[%c23, %c0_121, %c0_122] : memref<25x1x128xf32, #tpu.memory_space<vmem>>, vector<1x1x128xf32>
    %293 = vector.shape_cast %292 : vector<1x1x128xf32> to vector<1x128xf32>
    %294 = vector.shape_cast %293 : vector<1x128xf32> to vector<1x1x128xf32>
    %295 = vector.broadcast %294 : vector<1x1x128xf32> to vector<1x16x128xf32>
    %296 = arith.mulf %291, %295 : vector<1x16x128xf32>
    %297 = arith.addf %290, %296 : vector<1x16x128xf32>
    %c112_i32_123 = arith.constant 112 : i32
    %298 = tpu.dynamic_rotate %270 by %c112_i32_123 dim 2 : vector<1x16x128xf32>, i32 -> vector<1x16x128xf32>
    %c24 = arith.constant 24 : index
    %c0_124 = arith.constant 0 : index
    %c0_125 = arith.constant 0 : index
    %299 = vector.load %arg4[%c24, %c0_124, %c0_125] : memref<25x1x128xf32, #tpu.memory_space<vmem>>, vector<1x1x128xf32>
    %300 = vector.shape_cast %299 : vector<1x1x128xf32> to vector<1x128xf32>
    %301 = vector.shape_cast %300 : vector<1x128xf32> to vector<1x1x128xf32>
    %302 = vector.broadcast %301 : vector<1x1x128xf32> to vector<1x16x128xf32>
    %303 = arith.mulf %298, %302 : vector<1x16x128xf32>
    %304 = arith.addf %297, %303 : vector<1x16x128xf32>
    %c0_126 = arith.constant 0 : index
    %c0_127 = arith.constant 0 : index
    %305 = vector.load %arg5[%c0_126, %c0_127] : memref<1x128xf32, #tpu.memory_space<vmem>>, vector<1x128xf32>
    %306 = vector.shape_cast %305 : vector<1x128xf32> to vector<1x1x128xf32>
    %307 = vector.broadcast %306 : vector<1x1x128xf32> to vector<1x16x128xf32>
    %308 = arith.addf %304, %307 : vector<1x16x128xf32>
    %cst_128 = arith.constant 2.000000e+01 : f32
    %309 = vector.broadcast %cst_128 : f32 to vector<1x16x128xf32>
    %310 = arith.minimumf %308, %309 : vector<1x16x128xf32>
    %311 = math.exp %310 : vector<1x16x128xf32>
    %cst_129 = arith.constant 2.000000e+00 : f32
    %312 = vector.broadcast %cst_129 : f32 to vector<1x16x128xf32>
    %313 = arith.addf %311, %312 : vector<1x16x128xf32>
    %314 = arith.mulf %311, %313 : vector<1x16x128xf32>
    %cst_130 = arith.constant 2.000000e+00 : f32
    %315 = vector.broadcast %cst_130 : f32 to vector<1x16x128xf32>
    %316 = arith.addf %314, %315 : vector<1x16x128xf32>
    %317 = tpu.reciprocal %316 {approx = true} : vector<1x16x128xf32> -> vector<1x16x128xf32>
    %318 = arith.mulf %316, %317 : vector<1x16x128xf32>
    %cst_131 = arith.constant 2.000000e+00 : f32
    %319 = vector.broadcast %cst_131 : f32 to vector<1x16x128xf32>
    %320 = arith.subf %319, %318 : vector<1x16x128xf32>
    %321 = arith.mulf %317, %320 : vector<1x16x128xf32>
    %322 = arith.mulf %314, %321 : vector<1x16x128xf32>
    %323 = arith.mulf %308, %322 : vector<1x16x128xf32>
    %c0_132 = arith.constant 0 : index
    %c1_133 = arith.constant 1 : index
    %c0_134 = arith.constant 0 : index
    %c0_135 = arith.constant 0 : index
    %324 = vector.load %arg6[%c0_132, %c1_133, %c0_134, %c0_135] : memref<1x2x16x128xf32, #tpu.memory_space<vmem>>, vector<1x1x16x128xf32>
    %325 = vector.shape_cast %324 : vector<1x1x16x128xf32> to vector<1x16x128xf32>
    %326 = vector.shape_cast %323 : vector<1x16x128xf32> to vector<1x1x16x128xf32>
    tpu.vector_store %arg6[%c0_132, %c1_133, %c0_134, %c0_135], %326 {strides = array<i32>} : memref<1x2x16x128xf32, #tpu.memory_space<vmem>>, vector<1x1x16x128xf32>,
    return
  }
  func.func @transform_0(%arg0: i32) -> (i32, i32, i32) {
    %c0_i32 = arith.constant 0 : i32
    %c0_i32_0 = arith.constant 0 : i32
    %c0_i32_1 = arith.constant 0 : i32
    return %arg0, %c0_i32, %c0_i32_0 : i32, i32, i32
  }
  func.func @transform_1(%arg0: i32) -> (i32, i32, i32) {
    %c0_i32 = arith.constant 0 : i32
    %c0_i32_0 = arith.constant 0 : i32
    %c0_i32_1 = arith.constant 0 : i32
    %c0_i32_2 = arith.constant 0 : i32
    return %c0_i32, %c0_i32_0, %c0_i32_1 : i32, i32, i32
  }
  func.func @transform_2(%arg0: i32) -> (i32, i32) {
    %c0_i32 = arith.constant 0 : i32
    %c0_i32_0 = arith.constant 0 : i32
    %c0_i32_1 = arith.constant 0 : i32
    return %c0_i32, %c0_i32_0 : i32, i32
  }
  func.func @transform_3(%arg0: i32) -> (i32, i32, i32) {
    %c0_i32 = arith.constant 0 : i32
    %c0_i32_0 = arith.constant 0 : i32
    %c0_i32_1 = arith.constant 0 : i32
    %c0_i32_2 = arith.constant 0 : i32
    return %c0_i32, %c0_i32_0, %c0_i32_1 : i32, i32, i32
  }
  func.func @transform_4(%arg0: i32) -> (i32, i32) {
    %c0_i32 = arith.constant 0 : i32
    %c0_i32_0 = arith.constant 0 : i32
    %c0_i32_1 = arith.constant 0 : i32
    return %c0_i32, %c0_i32_0 : i32, i32
  }
  func.func @transform_5(%arg0: i32) -> (i32, i32, i32, i32) {
    %c0_i32 = arith.constant 0 : i32
    %c0_i32_0 = arith.constant 0 : i32
    %c0_i32_1 = arith.constant 0 : i32
    %c0_i32_2 = arith.constant 0 : i32
    return %arg0, %c0_i32, %c0_i32_0, %c0_i32_1 : i32, i32, i32, i32
  }
}

</mosaic_0001>

<llo_original>
// kernel: tile.44
$region0: #{tile.44}
  #allocation0 [shape = 's32[1]{0}', space=sflag, size = 0x4, scoped, tag = 'scoped memory for tile.44']
  %s0 = inlined_call_operand.vmem [shape: f32[8], index: 0, kind: input, shape index: {}]
  %s1 = inlined_call_operand.vmem [shape: f32[16,8], index: 1, kind: output, shape index: {}]
  // Predicated region
  $region2: #{tile.44} parent=0 // pred_check
    _
  $region3: #{tile.44} parent=0 // pred_check_branch
    %3 = sbr.rel (0) target = $region5
  $region4: #{tile.44} parent=0 // pred_region
    _
  $region5: #{tile.44} parent=0 // pred_fallthru
    _
  %v4 = vld [vmem:[%s0] ss:$0 sm:$0xff]
  %5 = vst [vmem:[%s1] sm:$0xff] %v4
  %s6 = scalar_lea.vmem %s1, 8
  %7 = vst [vmem:[%s6] sm:$0xff] %v4

// kernel: tile.45
$region0: #{tile.45}
  %s0 = inlined_call_operand.vmem [shape: f32[16,8], index: 0, kind: input, shape index: {}]
  %s1 = inlined_call_operand.vmem [shape: f32[1,128], index: 1, kind: output, shape index: {}]
  $region1: #{tile.45} parent=0
    #allocation0 [shape = 'u8[4096]{0}', space=vmem, size = 0x1000, scoped, tag = 'scoped mem for output reshape']
    %v2 = vld [vmem:[%s0] sm:$0x1]
    %vm3 = vcmask 64512
    %4 = vst.msk [vmem:[#allocation0] sm:$0x1] %vm3, %v2
    %s5 = scalar_lea.vmem %s0, 15
    %v6 = vld [vmem:[%s5] sm:$0x1]
    %7 = vrot.lane.b32.xlu0 %v6, 120
    %v8 = vpop.permute.xlu0 %7
    %vm9 = vcmask 1048512
    %10 = vst.msk [vmem:[#allocation0] sm:$0x1] %vm9, %v8
    %s11 = scalar_lea.vmem %s0, 14
    %v12 = vld [vmem:[%s11] sm:$0x1]
    %13 = vrot.lane.b32.xlu0 %v12, 112
    %v14 = vpop.permute.xlu0 %13
    %vm15 = vcmask 982912
    %16 = vst.msk [vmem:[#allocation0] sm:$0x1] %vm15, %v14
    %s17 = scalar_lea.vmem %s0, 13
    %v18 = vld [vmem:[%s17] sm:$0x1]
    %19 = vrot.lane.b32.xlu0 %v18, 104
    %v20 = vpop.permute.xlu0 %19
    %vm21 = vcmask 917312
    %22 = vst.msk [vmem:[#allocation0] sm:$0x1] %vm21, %v20
    %s23 = scalar_lea.vmem %s0, 12
    %v24 = vld [vmem:[%s23] sm:$0x1]
    %25 = vrot.lane.b32.xlu0 %v24, 96
    %v26 = vpop.permute.xlu0 %25
    %vm27 = vcmask 851712
    %28 = vst.msk [vmem:[#allocation0] sm:$0x1] %vm27, %v26
    %s29 = scalar_lea.vmem %s0, 11
    %v30 = vld [vmem:[%s29] sm:$0x1]
    %31 = vrot.lane.b32.xlu0 %v30, 88
    %v32 = vpop.permute.xlu0 %31
    %vm33 = vcmask 786112
    %34 = vst.msk [vmem:[#allocation0] sm:$0x1] %vm33, %v32
    %s35 = scalar_lea.vmem %s0, 10
    %v36 = vld [vmem:[%s35] sm:$0x1]
    %37 = vrot.lane.b32.xlu0 %v36, 80
    %v38 = vpop.permute.xlu0 %37
    %vm39 = vcmask 720512
    %40 = vst.msk [vmem:[#allocation0] sm:$0x1] %vm39, %v38
    %s41 = scalar_lea.vmem %s0, 9
    %v42 = vld [vmem:[%s41] sm:$0x1]
    %43 = vrot.lane.b32.xlu0 %v42, 72
    %v44 = vpop.permute.xlu0 %43
    %vm45 = vcmask 654912
    %46 = vst.msk [vmem:[#allocation0] sm:$0x1] %vm45, %v44
    %s47 = scalar_lea.vmem %s0, 8
    %v48 = vld [vmem:[%s47] sm:$0x1]
    %49 = vrot.lane.b32.xlu0 %v48, 64
    %v50 = vpop.permute.xlu0 %49
    %vm51 = vcmask 589312
    %52 = vst.msk [vmem:[#allocation0] sm:$0x1] %vm51, %v50
    %s53 = scalar_lea.vmem %s0, 7
    %v54 = vld [vmem:[%s53] sm:$0x1]
    %55 = vrot.lane.b32.xlu0 %v54, 56
    %v56 = vpop.permute.xlu0 %55
    %vm57 = vcmask 523712
    %58 = vst.msk [vmem:[#allocation0] sm:$0x1] %vm57, %v56
    %s59 = scalar_lea.vmem %s0, 6
    %v60 = vld [vmem:[%s59] sm:$0x1]
    %61 = vrot.lane.b32.xlu0 %v60, 48
    %v62 = vpop.permute.xlu0 %61
    %vm63 = vcmask 458112
    %64 = vst.msk [vmem:[#allocation0] sm:$0x1] %vm63, %v62
    %s65 = scalar_lea.vmem %s0, 5
    %v66 = vld [vmem:[%s65] sm:$0x1]
    %67 = vrot.lane.b32.xlu0 %v66, 40
    %v68 = vpop.permute.xlu0 %67
    %vm69 = vcmask 392512
    %70 = vst.msk [vmem:[#allocation0] sm:$0x1] %vm69, %v68
    %s71 = scalar_lea.vmem %s0, 4
    %v72 = vld [vmem:[%s71] sm:$0x1]
    %73 = vrot.lane.b32.xlu0 %v72, 32
    %v74 = vpop.permute.xlu0 %73
    %vm75 = vcmask 326912
    %76 = vst.msk [vmem:[#allocation0] sm:$0x1] %vm75, %v74
    %s77 = scalar_lea.vmem %s0, 3
    %v78 = vld [vmem:[%s77] sm:$0x1]
    %79 = vrot.lane.b32.xlu0 %v78, 24
    %v80 = vpop.permute.xlu0 %79
    %vm81 = vcmask 261312
    %82 = vst.msk [vmem:[#allocation0] sm:$0x1] %vm81, %v80
    %s83 = scalar_lea.vmem %s0, 2
    %v84 = vld [vmem:[%s83] sm:$0x1]
    %85 = vrot.lane.b32.xlu0 %v84, 16
    %v86 = vpop.permute.xlu0 %85
    %vm87 = vcmask 195712
    %88 = vst.msk [vmem:[#allocation0] sm:$0x1] %vm87, %v86
    %s89 = scalar_lea.vmem %s0, 1
    %v90 = vld [vmem:[%s89] sm:$0x1]
    %91 = vrot.lane.b32.xlu0 %v90, 8
    %v92 = vpop.permute.xlu0 %91
    %vm93 = vcmask 130112
    %94 = vst.msk [vmem:[#allocation0] sm:$0x1] %vm93, %v92
    %s96 = sshll.u32 1, 1
    %s97 = ssub.s32 %s96, 1
    %v99 = vld [vmem:[#allocation0] sm:%s97]
    %s100 = sshll.u32 1, 1
    %s101 = ssub.s32 %s100, 1
    %102 = vst [vmem:[%s1] sm:%s101] %v99

// kernel: mul.6
$region0: #{mul.6}
  #allocation0 [shape = 's32[1]{0}', space=sflag, size = 0x4, scoped, tag = 'scoped memory for mul.6']
  %s0 = inlined_call_operand.vmem [shape: f32[25,1,128], index: 0, kind: input, shape index: {}]
  %s1 = inlined_call_operand.vmem [shape: f32[25,1,128], index: 1, kind: input, shape index: {}]
  %s2 = inlined_call_operand.vmem [shape: f32[25,1,128], index: 2, kind: output, shape index: {}]
  %v3 = vld [vmem:[%s0] sm:$0x1]
  %v4 = vld [vmem:[%s1] sm:$0x1]
  %5 = xla_tuple %v3, %v4
  %6 = xla_tuple %5
  %v7 = vmul.f32 %v3, %v4
  %8 = xla_tuple %v7
  %9 = vst [vmem:[%s2] sm:$0x1] %v7
  %s10 = scalar_lea.vmem %s0, 1
  %v11 = vld [vmem:[%s10] sm:$0x1]
  %s12 = scalar_lea.vmem %s1, 1
  %v13 = vld [vmem:[%s12] sm:$0x1]
  %14 = xla_tuple %v11, %v13
  %15 = xla_tuple %14
  %v16 = vmul.f32 %v11, %v13
  %17 = xla_tuple %v16
  %s18 = scalar_lea.vmem %s2, 1
  %19 = vst [vmem:[%s18] sm:$0x1] %v16
  %s20 = scalar_lea.vmem %s0, 2
  %v21 = vld [vmem:[%s20] sm:$0x1]
  %s22 = scalar_lea.vmem %s1, 2
  %v23 = vld [vmem:[%s22] sm:$0x1]
  %24 = xla_tuple %v21, %v23
  %25 = xla_tuple %24
  %v26 = vmul.f32 %v21, %v23
  %27 = xla_tuple %v26
  %s28 = scalar_lea.vmem %s2, 2
  %29 = vst [vmem:[%s28] sm:$0x1] %v26
  %s30 = scalar_lea.vmem %s0, 3
  %v31 = vld [vmem:[%s30] sm:$0x1]
  %s32 = scalar_lea.vmem %s1, 3
  %v33 = vld [vmem:[%s32] sm:$0x1]
  %34 = xla_tuple %v31, %v33
  %35 = xla_tuple %34
  %v36 = vmul.f32 %v31, %v33
  %37 = xla_tuple %v36
  %s38 = scalar_lea.vmem %s2, 3
  %39 = vst [vmem:[%s38] sm:$0x1] %v36
  %s40 = scalar_lea.vmem %s0, 4
  %v41 = vld [vmem:[%s40] sm:$0x1]
  %s42 = scalar_lea.vmem %s1, 4
  %v43 = vld [vmem:[%s42] sm:$0x1]
  %44 = xla_tuple %v41, %v43
  %45 = xla_tuple %44
  %v46 = vmul.f32 %v41, %v43
  %47 = xla_tuple %v46
  %s48 = scalar_lea.vmem %s2, 4
  %49 = vst [vmem:[%s48] sm:$0x1] %v46
  %s50 = scalar_lea.vmem %s0, 5
  %v51 = vld [vmem:[%s50] sm:$0x1]
  %s52 = scalar_lea.vmem %s1, 5
  %v53 = vld [vmem:[%s52] sm:$0x1]
  %54 = xla_tuple %v51, %v53
  %55 = xla_tuple %54
  %v56 = vmul.f32 %v51, %v53
  %57 = xla_tuple %v56
  %s58 = scalar_lea.vmem %s2, 5
  %59 = vst [vmem:[%s58] sm:$0x1] %v56
  %s60 = scalar_lea.vmem %s0, 6
  %v61 = vld [vmem:[%s60] sm:$0x1]
  %s62 = scalar_lea.vmem %s1, 6
  %v63 = vld [vmem:[%s62] sm:$0x1]
  %64 = xla_tuple %v61, %v63
  %65 = xla_tuple %64
  %v66 = vmul.f32 %v61, %v63
  %67 = xla_tuple %v66
  %s68 = scalar_lea.vmem %s2, 6
  %69 = vst [vmem:[%s68] sm:$0x1] %v66
  %s70 = scalar_lea.vmem %s0, 7
  %v71 = vld [vmem:[%s70] sm:$0x1]
  %s72 = scalar_lea.vmem %s1, 7
  %v73 = vld [vmem:[%s72] sm:$0x1]
  %74 = xla_tuple %v71, %v73
  %75 = xla_tuple %74
  %v76 = vmul.f32 %v71, %v73
  %77 = xla_tuple %v76
  %s78 = scalar_lea.vmem %s2, 7
  %79 = vst [vmem:[%s78] sm:$0x1] %v76
  %s80 = scalar_lea.vmem %s0, 8
  %v81 = vld [vmem:[%s80] sm:$0x1]
  %s82 = scalar_lea.vmem %s1, 8
  %v83 = vld [vmem:[%s82] sm:$0x1]
  %84 = xla_tuple %v81, %v83
  %85 = xla_tuple %84
  %v86 = vmul.f32 %v81, %v83
  %87 = xla_tuple %v86
  %s88 = scalar_lea.vmem %s2, 8
  %89 = vst [vmem:[%s88] sm:$0x1] %v86
  %s90 = scalar_lea.vmem %s0, 9
  %v91 = vld [vmem:[%s90] sm:$0x1]
  %s92 = scalar_lea.vmem %s1, 9
  %v93 = vld [vmem:[%s92] sm:$0x1]
  %94 = xla_tuple %v91, %v93
  %95 = xla_tuple %94
  %v96 = vmul.f32 %v91, %v93
  %97 = xla_tuple %v96
  %s98 = scalar_lea.vmem %s2, 9
  %99 = vst [vmem:[%s98] sm:$0x1] %v96
  %s100 = scalar_lea.vmem %s0, 10
  %v101 = vld [vmem:[%s100] sm:$0x1]
  %s102 = scalar_lea.vmem %s1, 10
  %v103 = vld [vmem:[%s102] sm:$0x1]
  %104 = xla_tuple %v101, %v103
  %105 = xla_tuple %104
  %v106 = vmul.f32 %v101, %v103
  %107 = xla_tuple %v106
  %s108 = scalar_lea.vmem %s2, 10
  %109 = vst [vmem:[%s108] sm:$0x1] %v106
  %s110 = scalar_lea.vmem %s0, 11
  %v111 = vld [vmem:[%s110] sm:$0x1]
  %s112 = scalar_lea.vmem %s1, 11
  %v113 = vld [vmem:[%s112] sm:$0x1]
  %114 = xla_tuple %v111, %v113
  %115 = xla_tuple %114
  %v116 = vmul.f32 %v111, %v113
  %117 = xla_tuple %v116
  %s118 = scalar_lea.vmem %s2, 11
  %119 = vst [vmem:[%s118] sm:$0x1] %v116
  %s120 = scalar_lea.vmem %s0, 12
  %v121 = vld [vmem:[%s120] sm:$0x1]
  %s122 = scalar_lea.vmem %s1, 12
  %v123 = vld [vmem:[%s122] sm:$0x1]
  %124 = xla_tuple %v121, %v123
  %125 = xla_tuple %124
  %v126 = vmul.f32 %v121, %v123
  %127 = xla_tuple %v126
  %s128 = scalar_lea.vmem %s2, 12
  %129 = vst [vmem:[%s128] sm:$0x1] %v126
  %s130 = scalar_lea.vmem %s0, 13
  %v131 = vld [vmem:[%s130] sm:$0x1]
  %s132 = scalar_lea.vmem %s1, 13
  %v133 = vld [vmem:[%s132] sm:$0x1]
  %134 = xla_tuple %v131, %v133
  %135 = xla_tuple %134
  %v136 = vmul.f32 %v131, %v133
  %137 = xla_tuple %v136
  %s138 = scalar_lea.vmem %s2, 13
  %139 = vst [vmem:[%s138] sm:$0x1] %v136
  %s140 = scalar_lea.vmem %s0, 14
  %v141 = vld [vmem:[%s140] sm:$0x1]
  %s142 = scalar_lea.vmem %s1, 14
  %v143 = vld [vmem:[%s142] sm:$0x1]
  %144 = xla_tuple %v141, %v143
  %145 = xla_tuple %144
  %v146 = vmul.f32 %v141, %v143
  %147 = xla_tuple %v146
  %s148 = scalar_lea.vmem %s2, 14
  %149 = vst [vmem:[%s148] sm:$0x1] %v146
  %s150 = scalar_lea.vmem %s0, 15
  %v151 = vld [vmem:[%s150] sm:$0x1]
  %s152 = scalar_lea.vmem %s1, 15
  %v153 = vld [vmem:[%s152] sm:$0x1]
  %154 = xla_tuple %v151, %v153
  %155 = xla_tuple %154
  %v156 = vmul.f32 %v151, %v153
  %157 = xla_tuple %v156
  %s158 = scalar_lea.vmem %s2, 15
  %159 = vst [vmem:[%s158] sm:$0x1] %v156
  %s160 = scalar_lea.vmem %s0, 16
  %v161 = vld [vmem:[%s160] sm:$0x1]
  %s162 = scalar_lea.vmem %s1, 16
  %v163 = vld [vmem:[%s162] sm:$0x1]
  %164 = xla_tuple %v161, %v163
  %165 = xla_tuple %164
  %v166 = vmul.f32 %v161, %v163
  %167 = xla_tuple %v166
  %s168 = scalar_lea.vmem %s2, 16
  %169 = vst [vmem:[%s168] sm:$0x1] %v166
  %s170 = scalar_lea.vmem %s0, 17
  %v171 = vld [vmem:[%s170] sm:$0x1]
  %s172 = scalar_lea.vmem %s1, 17
  %v173 = vld [vmem:[%s172] sm:$0x1]
  %174 = xla_tuple %v171, %v173
  %175 = xla_tuple %174
  %v176 = vmul.f32 %v171, %v173
  %177 = xla_tuple %v176
  %s178 = scalar_lea.vmem %s2, 17
  %179 = vst [vmem:[%s178] sm:$0x1] %v176
  %s180 = scalar_lea.vmem %s0, 18
  %v181 = vld [vmem:[%s180] sm:$0x1]
  %s182 = scalar_lea.vmem %s1, 18
  %v183 = vld [vmem:[%s182] sm:$0x1]
  %184 = xla_tuple %v181, %v183
  %185 = xla_tuple %184
  %v186 = vmul.f32 %v181, %v183
  %187 = xla_tuple %v186
  %s188 = scalar_lea.vmem %s2, 18
  %189 = vst [vmem:[%s188] sm:$0x1] %v186
  %s190 = scalar_lea.vmem %s0, 19
  %v191 = vld [vmem:[%s190] sm:$0x1]
  %s192 = scalar_lea.vmem %s1, 19
  %v193 = vld [vmem:[%s192] sm:$0x1]
  %194 = xla_tuple %v191, %v193
  %195 = xla_tuple %194
  %v196 = vmul.f32 %v191, %v193
  %197 = xla_tuple %v196
  %s198 = scalar_lea.vmem %s2, 19
  %199 = vst [vmem:[%s198] sm:$0x1] %v196
  %s200 = scalar_lea.vmem %s0, 20
  %v201 = vld [vmem:[%s200] sm:$0x1]
  %s202 = scalar_lea.vmem %s1, 20
  %v203 = vld [vmem:[%s202] sm:$0x1]
  %204 = xla_tuple %v201, %v203
  %205 = xla_tuple %204
  %v206 = vmul.f32 %v201, %v203
  %207 = xla_tuple %v206
  %s208 = scalar_lea.vmem %s2, 20
  %209 = vst [vmem:[%s208] sm:$0x1] %v206
  %s210 = scalar_lea.vmem %s0, 21
  %v211 = vld [vmem:[%s210] sm:$0x1]
  %s212 = scalar_lea.vmem %s1, 21
  %v213 = vld [vmem:[%s212] sm:$0x1]
  %214 = xla_tuple %v211, %v213
  %215 = xla_tuple %214
  %v216 = vmul.f32 %v211, %v213
  %217 = xla_tuple %v216
  %s218 = scalar_lea.vmem %s2, 21
  %219 = vst [vmem:[%s218] sm:$0x1] %v216
  %s220 = scalar_lea.vmem %s0, 22
  %v221 = vld [vmem:[%s220] sm:$0x1]
  %s222 = scalar_lea.vmem %s1, 22
  %v223 = vld [vmem:[%s222] sm:$0x1]
  %224 = xla_tuple %v221, %v223
  %225 = xla_tuple %224
  %v226 = vmul.f32 %v221, %v223
  %227 = xla_tuple %v226
  %s228 = scalar_lea.vmem %s2, 22
  %229 = vst [vmem:[%s228] sm:$0x1] %v226
  %s230 = scalar_lea.vmem %s0, 23
  %v231 = vld [vmem:[%s230] sm:$0x1]
  %s232 = scalar_lea.vmem %s1, 23
  %v233 = vld [vmem:[%s232] sm:$0x1]
  %234 = xla_tuple %v231, %v233
  %235 = xla_tuple %234
  %v236 = vmul.f32 %v231, %v233
  %237 = xla_tuple %v236
  %s238 = scalar_lea.vmem %s2, 23
  %239 = vst [vmem:[%s238] sm:$0x1] %v236
  %s240 = scalar_lea.vmem %s0, 24
  %v241 = vld [vmem:[%s240] sm:$0x1]
  %s242 = scalar_lea.vmem %s1, 24
  %v243 = vld [vmem:[%s242] sm:$0x1]
  %244 = xla_tuple %v241, %v243
  %245 = xla_tuple %244
  %v246 = vmul.f32 %v241, %v243
  %247 = xla_tuple %v246
  %s248 = scalar_lea.vmem %s2, 24
  %249 = vst [vmem:[%s248] sm:$0x1] %v246

// kernel: ghostconv.1
$region0: #{ghostconv.1}
  #allocation0 [shape = 'u32[]', space=smem, size = 0x4, offset = 0x4, fixed_abs, tag = 'smem constant byte address 0x4 - core index']
  #allocation1 [shape = 'u32[144,128]{1,0:T(1,128)}', space=vmem, size = 0x12000, scoped, tag = 'internal scratch']
  %s0 = inlined_call_operand.vmem [shape: f32[2,16,128], index: 0, kind: input, shape index: {}]
  %s1 = inlined_call_operand.vmem [shape: f32[15,1,128], index: 1, kind: input, shape index: {}]
  %s2 = inlined_call_operand.vmem [shape: f32[1,128], index: 2, kind: input, shape index: {}]
  %s3 = inlined_call_operand.vmem [shape: f32[25,1,128], index: 3, kind: input, shape index: {}]
  %s4 = inlined_call_operand.vmem [shape: f32[1,128], index: 4, kind: input, shape index: {}]
  %s5 = inlined_call_operand.vmem [shape: f32[2,2,16,128], index: 5, kind: output, shape index: {}]
  %s6 = sld [smem:[#allocation0]]
  $region53: #{ghostconv.1} parent=0
    _
  %s8 = ssub.s32 1, %s6
  %s9 = scalar_select 0, %s8, %s6
  loop: start=0, step=1, limit=4
  $region2: #{ghostconv.1} parent=0 // loop_pre_header
    _
  $region3: #{ghostconv.1} parent=0 // loop_header
    %s11 = sphi 0, %s15
    %p12 = scmp.ge.s32.totalorder %s11, 4
    %s21 = sphi 0, %s23
    %s24 = sphi 0, %s21
    %s25 = sphi 0, %s24
    %s41 = sphi 0, %s25
    %s45 = sphi 0, %s45
    %s47 = sphi 0, %s45
    %s48 = sphi 0, %s47
    %s62 = sphi 0, %s48
    %s66 = sphi 0, %s66
    %s68 = sphi 0, %s66
    %s69 = sphi 0, %s68
    %s83 = sphi 0, %s69
    %s87 = sphi 0, %s87
    %s89 = sphi 0, %s87
    %s90 = sphi 0, %s89
    %s104 = sphi 0, %s90
    %s108 = sphi 0, %s108
    %s110 = sphi 0, %s108
    %s111 = sphi 0, %s110
    %s125 = sphi 0, %s111
    %s131 = sphi 0, %s133
    %s134 = sphi 0, %s131
    %s135 = sphi 0, %s134
    %s151 = sphi 0, %s135
  $region4: #{ghostconv.1} parent=0 // loop_header_branch
    %14 = sbr.rel (%p12) target = $region8
  $region5: #{ghostconv.1} parent=0 // loop_body
    %s16 = ssub.s32 %s11, 1
    %s17 = ssub.s32 %s11, 2
    %s18 = sadd.s32 %s11, 1
    %s19 = ssub.s32 %s11, %s18
    %p20 = scmp.eq.s32.totalorder %s19, 0
    %s22 = sadd.s32 %s21, 1
    %s23 = scalar_select %p20, %s21, %s22
    %p26 = pneg %p20
    %p27 = scmp.eq.s32.totalorder %s11, 1
    %p28 = por %p26, %p27
    %p29 = scmp.ne.s32.totalorder %s21, %s24
    %p30 = scmp.eq.s32.totalorder %s11, 0
    %p31 = por %p29, %p30
    %p32 = scmp.ne.s32.totalorder %s21, %s24
    %p33 = scmp.eq.s32.totalorder %s16, 1
    %p34 = por %p32, %p33
    %p35 = scmp.ne.s32.totalorder %s24, %s25
    %p36 = scmp.eq.s32.totalorder %s16, 0
    %p37 = por %p35, %p36
    %p38 = scmp.ne.s32.totalorder %s24, %s25
    %p39 = scmp.eq.s32.totalorder %s17, 1
    %p40 = por %p38, %p39
    %p42 = scmp.ne.s32.totalorder %s25, %s41
    %p43 = scmp.eq.s32.totalorder %s17, 0
    %p44 = por %p42, %p43
    %s46 = sadd.s32 %s45, 1
    %p49 = scmp.eq.s32.totalorder %s11, 1
    %p50 = scmp.ne.s32.totalorder %s45, %s47
    %p51 = scmp.eq.s32.totalorder %s11, 0
    %p52 = por %p50, %p51
    %p53 = scmp.ne.s32.totalorder %s45, %s47
    %p54 = scmp.eq.s32.totalorder %s16, 1
    %p55 = por %p53, %p54
    %p56 = scmp.ne.s32.totalorder %s47, %s48
    %p57 = scmp.eq.s32.totalorder %s16, 0
    %p58 = por %p56, %p57
    %p59 = scmp.ne.s32.totalorder %s47, %s48
    %p60 = scmp.eq.s32.totalorder %s17, 1
    %p61 = por %p59, %p60
    %p63 = scmp.ne.s32.totalorder %s48, %s62
    %p64 = scmp.eq.s32.totalorder %s17, 0
    %p65 = por %p63, %p64
    %s67 = sadd.s32 %s66, 1
    %p70 = scmp.eq.s32.totalorder %s11, 1
    %p71 = scmp.ne.s32.totalorder %s66, %s68
    %p72 = scmp.eq.s32.totalorder %s11, 0
    %p73 = por %p71, %p72
    %p74 = scmp.ne.s32.totalorder %s66, %s68
    %p75 = scmp.eq.s32.totalorder %s16, 1
    %p76 = por %p74, %p75
    %p77 = scmp.ne.s32.totalorder %s68, %s69
    %p78 = scmp.eq.s32.totalorder %s16, 0
    %p79 = por %p77, %p78
    %p80 = scmp.ne.s32.totalorder %s68, %s69
    %p81 = scmp.eq.s32.totalorder %s17, 1
    %p82 = por %p80, %p81
    %p84 = scmp.ne.s32.totalorder %s69, %s83
    %p85 = scmp.eq.s32.totalorder %s17, 0
    %p86 = por %p84, %p85
    %s88 = sadd.s32 %s87, 1
    %p91 = scmp.eq.s32.totalorder %s11, 1
    %p92 = scmp.ne.s32.totalorder %s87, %s89
    %p93 = scmp.eq.s32.totalorder %s11, 0
    %p94 = por %p92, %p93
    %p95 = scmp.ne.s32.totalorder %s87, %s89
    %p96 = scmp.eq.s32.totalorder %s16, 1
    %p97 = por %p95, %p96
    %p98 = scmp.ne.s32.totalorder %s89, %s90
    %p99 = scmp.eq.s32.totalorder %s16, 0
    %p100 = por %p98, %p99
    %p101 = scmp.ne.s32.totalorder %s89, %s90
    %p102 = scmp.eq.s32.totalorder %s17, 1
    %p103 = por %p101, %p102
    %p105 = scmp.ne.s32.totalorder %s90, %s104
    %p106 = scmp.eq.s32.totalorder %s17, 0
    %p107 = por %p105, %p106
    %s109 = sadd.s32 %s108, 1
    %p112 = scmp.eq.s32.totalorder %s11, 1
    %p113 = scmp.ne.s32.totalorder %s108, %s110
    %p114 = scmp.eq.s32.totalorder %s11, 0
    %p115 = por %p113, %p114
    %p116 = scmp.ne.s32.totalorder %s108, %s110
    %p117 = scmp.eq.s32.totalorder %s16, 1
    %p118 = por %p116, %p117
    %p119 = scmp.ne.s32.totalorder %s110, %s111
    %p120 = scmp.eq.s32.totalorder %s16, 0
    %p121 = por %p119, %p120
    %p122 = scmp.ne.s32.totalorder %s110, %s111
    %p123 = scmp.eq.s32.totalorder %s17, 1
    %p124 = por %p122, %p123
    %p126 = scmp.ne.s32.totalorder %s111, %s125
    %p127 = scmp.eq.s32.totalorder %s17, 0
    %p128 = por %p126, %p127
    %s129 = ssub.s32 %s11, %s18
    %p130 = scmp.eq.s32.totalorder %s129, 0
    %s132 = sadd.s32 %s131, 1
    %s133 = scalar_select %p130, %s131, %s132
    %p136 = pneg %p130
    %p137 = scmp.eq.s32.totalorder %s11, 1
    %p138 = por %p136, %p137
    %p139 = scmp.ne.s32.totalorder %s131, %s134
    %p140 = scmp.eq.s32.totalorder %s11, 0
    %p141 = por %p139, %p140
    %p142 = scmp.ne.s32.totalorder %s131, %s134
    %p143 = scmp.eq.s32.totalorder %s16, 1
    %p144 = por %p142, %p143
    %p145 = scmp.ne.s32.totalorder %s134, %s135
    %p146 = scmp.eq.s32.totalorder %s16, 0
    %p147 = por %p145, %p146
    %p148 = scmp.ne.s32.totalorder %s134, %s135
    %p149 = scmp.eq.s32.totalorder %s17, 1
    %p150 = por %p148, %p149
    %p152 = scmp.ne.s32.totalorder %s135, %s151
    %p153 = scmp.eq.s32.totalorder %s17, 0
    %p154 = por %p152, %p153
    %p155 = scmp.le.s32.totalorder 1, %s11
    %p156 = scmp.lt.s32.totalorder %s11, 3
    %p157 = pnand %p155, %p156
    %p158 = pneg %p157
    // Predicated region
    $region9: #{ghostconv.1} parent=5 // pred_check
      _
    $region10: #{ghostconv.1} parent=5 // pred_check_branch
      %160 = sbr.rel (%p157) target = $region12
    $region11: #{ghostconv.1} parent=5 // pred_region
      %s161 = ssub.s32 %s11, 1
      // Predicated region
      $region13: #{ghostconv.1} parent=11 // pred_check
        %p162 = pneg %p58
      $region14: #{ghostconv.1} parent=11 // pred_check_branch
        %164 = sbr.rel (%p162) target = $region16
      $region15: #{ghostconv.1} parent=11 // pred_region
        _
      $region16: #{ghostconv.1} parent=11 // pred_fallthru
        _
      // Predicated region
      $region17: #{ghostconv.1} parent=11 // pred_check
        %p165 = pneg %p79
      $region18: #{ghostconv.1} parent=11 // pred_check_branch
        %167 = sbr.rel (%p165) target = $region20
      $region19: #{ghostconv.1} parent=11 // pred_region
        _
      $region20: #{ghostconv.1} parent=11 // pred_fallthru
        _
      // Predicated region
      $region21: #{ghostconv.1} parent=11 // pred_check
        %p168 = pneg %p100
      $region22: #{ghostconv.1} parent=11 // pred_check_branch
        %170 = sbr.rel (%p168) target = $region24
      $region23: #{ghostconv.1} parent=11 // pred_region
        _
      $region24: #{ghostconv.1} parent=11 // pred_fallthru
        _
      // Predicated region
      $region25: #{ghostconv.1} parent=11 // pred_check
        %p171 = pneg %p121
      $region26: #{ghostconv.1} parent=11 // pred_check_branch
        %173 = sbr.rel (%p171) target = $region28
      $region27: #{ghostconv.1} parent=11 // pred_region
        _
      $region28: #{ghostconv.1} parent=11 // pred_fallthru
        _
    $region12: #{ghostconv.1} parent=5 // pred_fallthru
      _
    %p174 = scmp.lt.s32.totalorder %s11, 2
    // Predicated region
    $region29: #{ghostconv.1} parent=5 // pred_check
      %p175 = pneg %p174
    $region30: #{ghostconv.1} parent=5 // pred_check_branch
      %177 = sbr.rel (%p175) target = $region32
    $region31: #{ghostconv.1} parent=5 // pred_region
      // Predicated region
      $region33: #{ghostconv.1} parent=31 // pred_check
        %p178 = pneg %p31
      $region34: #{ghostconv.1} parent=31 // pred_check_branch
        %180 = sbr.rel (%p178) target = $region36
      $region35: #{ghostconv.1} parent=31 // pred_region
        %p181 = scmp.lt.s32.totalorder %s11, 1
        %s182 = scalar_select %p181, %s11, 1
        %s183 = smul.addr %s182, 2
        %s184 = smul.addr %s183, 8
        %s185 = scalar_lea.vmem %s0, %s184
      $region36: #{ghostconv.1} parent=31 // pred_fallthru
        _
    $region32: #{ghostconv.1} parent=5 // pred_fallthru
      _
    %p186 = scmp.le.s32.totalorder 1, %s11
    %p187 = scmp.lt.s32.totalorder %s11, 3
    %p188 = pnand %p186, %p187
    %p189 = pneg %p188
    // Predicated region
    $region37: #{ghostconv.1} parent=5 // pred_check
      _
    $region38: #{ghostconv.1} parent=5 // pred_check_branch
      %191 = sbr.rel (%p188) target = $region40
    $region39: #{ghostconv.1} parent=5 // pred_region
      %s192 = ssub.s32 %s11, 1
      %p193 = scmp.lt.s32.totalorder %s16, 1
      %s194 = scalar_select %p193, %s16, 1
      %s195 = smul.addr %s194, 2
      %s196 = smul.addr %s195, 8
      %s197 = scalar_lea.vmem %s0, %s196
      %p198 = pneg %p37
      %p199 = pneg %p34
      %p200 = pneg %p58
      %p201 = pneg %p55
      %p202 = pneg %p79
      %p203 = pneg %p76
      %p204 = pneg %p100
      %p205 = pneg %p97
      %p206 = pneg %p121
      %p207 = pneg %p118
      %p208 = pneg %p147
      %p209 = pneg %p144
      %p210 = scmp.lt.s32.totalorder %s16, 1
      %s211 = scalar_select %p210, %s16, 1
      %s212 = smul.addr %s211, 4
      %s213 = smul.addr %s212, 8
      %s214 = scalar_lea.vmem %s5, %s213
      %p215 = scmp.lt.s32.totalorder %s16, 1
      %s216 = scalar_select %p215, %s16, 1
      %s217 = smul.addr %s216, 2
      %s218 = smul.addr %s217, 8
      %s219 = scalar_lea.vmem %s0, %s218
      %p220 = scmp.lt.s32.totalorder %s16, 1
      %s221 = scalar_select %p220, %s16, 1
      %s222 = smul.addr %s221, 4
      %s223 = smul.addr %s222, 8
      %s224 = scalar_lea.vmem %s5, %s223
      %v225 = vld [vmem:[%s219] sm:$0xff]
      %v226 = vld [vmem:[%s219 + $0x8] sm:$0xff]
      %227 = vrot.lane.b32.xlu0 %v225, 121
      %v228 = vpop.permute.xlu0 %227
      %229 = vrot.lane.b32.xlu0 %v226, 121
      %v230 = vpop.permute.xlu0 %229
      %v231 = vld [vmem:[%s1] sm:$0x1]
      %v233 = vlaneseq
      %v234 = vshrl.u32 %v233, 7
      %v235 = vsub.s32 0, %v234
      %v236 = vrot.slane %v231, %v235
      %v238 = vmul.f32 %v228, %v236
      %v239 = vmul.f32 %v230, %v236
      %v240 = vadd.f32 %v238, 0.0
      %v241 = vadd.f32 %v239, 0.0
      %242 = vrot.lane.b32.xlu0 %v225, 122
      %v243 = vpop.permute.xlu0 %242
      %244 = vrot.lane.b32.xlu0 %v226, 122
      %v245 = vpop.permute.xlu0 %244
      %s246 = scalar_lea.vmem %s1, 1
      %v247 = vld [vmem:[%s246] sm:$0x1]
      %v249 = vlaneseq
      %v250 = vshrl.u32 %v249, 7
      %v251 = vsub.s32 0, %v250
      %v252 = vrot.slane %v247, %v251
      %v254 = vmul.f32 %v243, %v252
      %v255 = vmul.f32 %v245, %v252
      %v256 = vadd.f32 %v240, %v254
      %v257 = vadd.f32 %v241, %v255
      %258 = vrot.lane.b32.xlu0 %v225, 123
      %v259 = vpop.permute.xlu0 %258
      %260 = vrot.lane.b32.xlu0 %v226, 123
      %v261 = vpop.permute.xlu0 %260
      %s262 = scalar_lea.vmem %s1, 2
      %v263 = vld [vmem:[%s262] sm:$0x1]
      %v265 = vlaneseq
      %v266 = vshrl.u32 %v265, 7
      %v267 = vsub.s32 0, %v266
      %v268 = vrot.slane %v263, %v267
      %v270 = vmul.f32 %v259, %v268
      %v271 = vmul.f32 %v261, %v268
      %v272 = vadd.f32 %v256, %v270
      %v273 = vadd.f32 %v257, %v271
      %274 = vrot.lane.b32.xlu0 %v225, 124
      %v275 = vpop.permute.xlu0 %274
      %276 = vrot.lane.b32.xlu0 %v226, 124
      %v277 = vpop.permute.xlu0 %276
      %s278 = scalar_lea.vmem %s1, 3
      %v279 = vld [vmem:[%s278] sm:$0x1]
      %v281 = vlaneseq
      %v282 = vshrl.u32 %v281, 7
      %v283 = vsub.s32 0, %v282
      %v284 = vrot.slane %v279, %v283
      %v286 = vmul.f32 %v275, %v284
      %v287 = vmul.f32 %v277, %v284
      %v288 = vadd.f32 %v272, %v286
      %v289 = vadd.f32 %v273, %v287
      %290 = vrot.lane.b32.xlu0 %v225, 125
      %v291 = vpop.permute.xlu0 %290
      %292 = vrot.lane.b32.xlu0 %v226, 125
      %v293 = vpop.permute.xlu0 %292
      %s294 = scalar_lea.vmem %s1, 4
      %v295 = vld [vmem:[%s294] sm:$0x1]
      %v297 = vlaneseq
      %v298 = vshrl.u32 %v297, 7
      %v299 = vsub.s32 0, %v298
      %v300 = vrot.slane %v295, %v299
      %v302 = vmul.f32 %v291, %v300
      %v303 = vmul.f32 %v293, %v300
      %v304 = vadd.f32 %v288, %v302
      %v305 = vadd.f32 %v289, %v303
      %306 = vrot.lane.b32.xlu0 %v225, 126
      %v307 = vpop.permute.xlu0 %306
      %308 = vrot.lane.b32.xlu0 %v226, 126
      %v309 = vpop.permute.xlu0 %308
      %s310 = scalar_lea.vmem %s1, 5
      %v311 = vld [vmem:[%s310] sm:$0x1]
      %v313 = vlaneseq
      %v314 = vshrl.u32 %v313, 7
      %v315 = vsub.s32 0, %v314
      %v316 = vrot.slane %v311, %v315
      %v318 = vmul.f32 %v307, %v316
      %v319 = vmul.f32 %v309, %v316
      %v320 = vadd.f32 %v304, %v318
      %v321 = vadd.f32 %v305, %v319
      %322 = vrot.lane.b32.xlu0 %v225, 127
      %v323 = vpop.permute.xlu0 %322
      %324 = vrot.lane.b32.xlu0 %v226, 127
      %v325 = vpop.permute.xlu0 %324
      %s326 = scalar_lea.vmem %s1, 6
      %v327 = vld [vmem:[%s326] sm:$0x1]
      %v329 = vlaneseq
      %v330 = vshrl.u32 %v329, 7
      %v331 = vsub.s32 0, %v330
      %v332 = vrot.slane %v327, %v331
      %v334 = vmul.f32 %v323, %v332
      %v335 = vmul.f32 %v325, %v332
      %v336 = vadd.f32 %v320, %v334
      %v337 = vadd.f32 %v321, %v335
      %s338 = scalar_lea.vmem %s1, 7
      %v339 = vld [vmem:[%s338] sm:$0x1]
      %v341 = vlaneseq
      %v342 = vshrl.u32 %v341, 7
      %v343 = vsub.s32 0, %v342
      %v344 = vrot.slane %v339, %v343
      %v346 = vmul.f32 %v225, %v344
      %v347 = vmul.f32 %v226, %v344
      %v348 = vadd.f32 %v336, %v346
      %v349 = vadd.f32 %v337, %v347
      %350 = vrot.lane.b32.xlu0 %v225, 1
      %v351 = vpop.permute.xlu0 %350
      %352 = vrot.lane.b32.xlu0 %v226, 1
      %v353 = vpop.permute.xlu0 %352
      %s354 = scalar_lea.vmem %s1, 8
      %v355 = vld [vmem:[%s354] sm:$0x1]
      %v357 = vlaneseq
      %v358 = vshrl.u32 %v357, 7
      %v359 = vsub.s32 0, %v358
      %v360 = vrot.slane %v355, %v359
      %v362 = vmul.f32 %v351, %v360
      %v363 = vmul.f32 %v353, %v360
      %v364 = vadd.f32 %v348, %v362
      %v365 = vadd.f32 %v349, %v363
      %366 = vrot.lane.b32.xlu0 %v225, 2
      %v367 = vpop.permute.xlu0 %366
      %368 = vrot.lane.b32.xlu0 %v226, 2
      %v369 = vpop.permute.xlu0 %368
      %s370 = scalar_lea.vmem %s1, 9
      %v371 = vld [vmem:[%s370] sm:$0x1]
      %v373 = vlaneseq
      %v374 = vshrl.u32 %v373, 7
      %v375 = vsub.s32 0, %v374
      %v376 = vrot.slane %v371, %v375
      %v378 = vmul.f32 %v367, %v376
      %v379 = vmul.f32 %v369, %v376
      %v380 = vadd.f32 %v364, %v378
      %v381 = vadd.f32 %v365, %v379
      %382 = vrot.lane.b32.xlu0 %v225, 3
      %v383 = vpop.permute.xlu0 %382
      %384 = vrot.lane.b32.xlu0 %v226, 3
      %v385 = vpop.permute.xlu0 %384
      %s386 = scalar_lea.vmem %s1, 10
      %v387 = vld [vmem:[%s386] sm:$0x1]
      %v389 = vlaneseq
      %v390 = vshrl.u32 %v389, 7
      %v391 = vsub.s32 0, %v390
      %v392 = vrot.slane %v387, %v391
      %v394 = vmul.f32 %v383, %v392
      %v395 = vmul.f32 %v385, %v392
      %v396 = vadd.f32 %v380, %v394
      %v397 = vadd.f32 %v381, %v395
      %398 = vrot.lane.b32.xlu0 %v225, 4
      %v399 = vpop.permute.xlu0 %398
      %400 = vrot.lane.b32.xlu0 %v226, 4
      %v401 = vpop.permute.xlu0 %400
      %s402 = scalar_lea.vmem %s1, 11
      %v403 = vld [vmem:[%s402] sm:$0x1]
      %v405 = vlaneseq
      %v406 = vshrl.u32 %v405, 7
      %v407 = vsub.s32 0, %v406
      %v408 = vrot.slane %v403, %v407
      %v410 = vmul.f32 %v399, %v408
      %v411 = vmul.f32 %v401, %v408
      %v412 = vadd.f32 %v396, %v410
      %v413 = vadd.f32 %v397, %v411
      %414 = vrot.lane.b32.xlu0 %v225, 5
      %v415 = vpop.permute.xlu0 %414
      %416 = vrot.lane.b32.xlu0 %v226, 5
      %v417 = vpop.permute.xlu0 %416
      %s418 = scalar_lea.vmem %s1, 12
      %v419 = vld [vmem:[%s418] sm:$0x1]
      %v421 = vlaneseq
      %v422 = vshrl.u32 %v421, 7
      %v423 = vsub.s32 0, %v422
      %v424 = vrot.slane %v419, %v423
      %v426 = vmul.f32 %v415, %v424
      %v427 = vmul.f32 %v417, %v424
      %v428 = vadd.f32 %v412, %v426
      %v429 = vadd.f32 %v413, %v427
      %430 = vrot.lane.b32.xlu0 %v225, 6
      %v431 = vpop.permute.xlu0 %430
      %432 = vrot.lane.b32.xlu0 %v226, 6
      %v433 = vpop.permute.xlu0 %432
      %s434 = scalar_lea.vmem %s1, 13
      %v435 = vld [vmem:[%s434] sm:$0x1]
      %v437 = vlaneseq
      %v438 = vshrl.u32 %v437, 7
      %v439 = vsub.s32 0, %v438
      %v440 = vrot.slane %v435, %v439
      %v442 = vmul.f32 %v431, %v440
      %v443 = vmul.f32 %v433, %v440
      %v444 = vadd.f32 %v428, %v442
      %v445 = vadd.f32 %v429, %v443
      %446 = vrot.lane.b32.xlu0 %v225, 7
      %v447 = vpop.permute.xlu0 %446
      %448 = vrot.lane.b32.xlu0 %v226, 7
      %v449 = vpop.permute.xlu0 %448
      %s450 = scalar_lea.vmem %s1, 14
      %v451 = vld [vmem:[%s450] sm:$0x1]
      %v453 = vlaneseq
      %v454 = vshrl.u32 %v453, 7
      %v455 = vsub.s32 0, %v454
      %v456 = vrot.slane %v451, %v455
      %v458 = vmul.f32 %v447, %v456
      %v459 = vmul.f32 %v449, %v456
      %v460 = vadd.f32 %v444, %v458
      %v461 = vadd.f32 %v445, %v459
      %v462 = vld [vmem:[%s2] sm:$0x1]
      %v464 = vlaneseq
      %v465 = vshrl.u32 %v464, 7
      %v466 = vsub.s32 0, %v465
      %v467 = vrot.slane %v462, %v466
      %v469 = vadd.f32 %v460, %v467
      %v470 = vadd.f32 %v461, %v467
      %v471 = vmin.f32 %v469, 20.0
      %v472 = vmin.f32 %v470, 20.0
      %v473 = vmul.f32 %v471, 1.442695
      %v474 = vpow.pop %v473
      %v475 = vmul.f32 %v472, 1.442695
      %v476 = vpow.pop %v475
      %v477 = vadd.f32 %v474, 2.0
      %v478 = vadd.f32 %v476, 2.0
      %v479 = vmul.f32 %v474, %v477
      %v480 = vmul.f32 %v476, %v478
      %v481 = vadd.f32 %v479, 2.0
      %v482 = vadd.f32 %v480, 2.0
      %v483 = vrcp.pop %v481
      %v484 = vrcp.pop %v482
      %v485 = vmul.f32 %v481, %v483
      %v486 = vmul.f32 %v482, %v484
      %v487 = vsub.f32 2.0, %v485
      %v488 = vsub.f32 2.0, %v486
      %v489 = vmul.f32 %v483, %v487
      %v490 = vmul.f32 %v484, %v488
      %v491 = vmul.f32 %v479, %v489
      %v492 = vmul.f32 %v480, %v490
      %v493 = vmul.f32 %v469, %v491
      %v494 = vmul.f32 %v470, %v492
      %495 = vst [vmem:[%s224] sm:$0xff] %v493
      %496 = vst [vmem:[%s224 + $0x8] sm:$0xff] %v494
      %vm499 = vcmask 1041408
      %v500 = vrot.slane %v493, 6
      %v501 = vrot.slane %v494, 6
      %v502 = vsel %vm499, %v500, %v501
      %v506 = vsel %vm499, 0.0, %v500
      %v507 = vsel %vm499, %v501, 0.0
      %508 = vrot.lane.b32.xlu0 %v506, 16
      %v509 = vpop.permute.xlu0 %508
      %510 = vrot.lane.b32.xlu0 %v502, 16
      %v511 = vpop.permute.xlu0 %510
      %v512 = vld [vmem:[%s3] sm:$0x1]
      %v514 = vlaneseq
      %v515 = vshrl.u32 %v514, 7
      %v516 = vsub.s32 0, %v515
      %v517 = vrot.slane %v512, %v516
      %v519 = vmul.f32 %v509, %v517
      %v520 = vmul.f32 %v511, %v517
      %v521 = vadd.f32 %v519, 0.0
      %v522 = vadd.f32 %v520, 0.0
      %523 = vrot.lane.b32.xlu0 %v506, 8
      %v524 = vpop.permute.xlu0 %523
      %525 = vrot.lane.b32.xlu0 %v502, 8
      %v526 = vpop.permute.xlu0 %525
      %s527 = scalar_lea.vmem %s3, 1
      %v528 = vld [vmem:[%s527] sm:$0x1]
      %v530 = vlaneseq
      %v531 = vshrl.u32 %v530, 7
      %v532 = vsub.s32 0, %v531
      %v533 = vrot.slane %v528, %v532
      %v535 = vmul.f32 %v524, %v533
      %v536 = vmul.f32 %v526, %v533
      %v537 = vadd.f32 %v521, %v535
      %v538 = vadd.f32 %v522, %v536
      %s539 = scalar_lea.vmem %s3, 2
      %v540 = vld [vmem:[%s539] sm:$0x1]
      %v542 = vlaneseq
      %v543 = vshrl.u32 %v542, 7
      %v544 = vsub.s32 0, %v543
      %v545 = vrot.slane %v540, %v544
      %v547 = vmul.f32 %v506, %v545
      %v548 = vmul.f32 %v502, %v545
      %v549 = vadd.f32 %v537, %v547
      %v550 = vadd.f32 %v538, %v548
      %551 = vrot.lane.b32.xlu0 %v506, 120
      %v552 = vpop.permute.xlu0 %551
      %553 = vrot.lane.b32.xlu0 %v502, 120
      %v554 = vpop.permute.xlu0 %553
      %s555 = scalar_lea.vmem %s3, 3
      %v556 = vld [vmem:[%s555] sm:$0x1]
      %v558 = vlaneseq
      %v559 = vshrl.u32 %v558, 7
      %v560 = vsub.s32 0, %v559
      %v561 = vrot.slane %v556, %v560
      %v563 = vmul.f32 %v552, %v561
      %v564 = vmul.f32 %v554, %v561
      %v565 = vadd.f32 %v549, %v563
      %v566 = vadd.f32 %v550, %v564
      %567 = vrot.lane.b32.xlu0 %v506, 112
      %v568 = vpop.permute.xlu0 %567
      %569 = vrot.lane.b32.xlu0 %v502, 112
      %v570 = vpop.permute.xlu0 %569
      %s571 = scalar_lea.vmem %s3, 4
      %v572 = vld [vmem:[%s571] sm:$0x1]
      %v574 = vlaneseq
      %v575 = vshrl.u32 %v574, 7
      %v576 = vsub.s32 0, %v575
      %v577 = vrot.slane %v572, %v576
      %v579 = vmul.f32 %v568, %v577
      %v580 = vmul.f32 %v570, %v577
      %v581 = vadd.f32 %v565, %v579
      %v582 = vadd.f32 %v566, %v580
      %vm585 = vcmask 1046528
      %v586 = vrot.slane %v506, 1
      %v587 = vrot.slane %v502, 1
      %v588 = vsel %vm585, %v586, %v587
      %v589 = vrot.slane %v507, 1
      %v590 = vsel %vm585, %v587, %v589
      %593 = vrot.lane.b32.xlu0 %v588, 16
      %v594 = vpop.permute.xlu0 %593
      %595 = vrot.lane.b32.xlu0 %v590, 16
      %v596 = vpop.permute.xlu0 %595
      %s597 = scalar_lea.vmem %s3, 5
      %v598 = vld [vmem:[%s597] sm:$0x1]
      %v600 = vlaneseq
      %v601 = vshrl.u32 %v600, 7
      %v602 = vsub.s32 0, %v601
      %v603 = vrot.slane %v598, %v602
      %v605 = vmul.f32 %v594, %v603
      %v606 = vmul.f32 %v596, %v603
      %v607 = vadd.f32 %v581, %v605
      %v608 = vadd.f32 %v582, %v606
      %609 = vrot.lane.b32.xlu0 %v588, 8
      %v610 = vpop.permute.xlu0 %609
      %611 = vrot.lane.b32.xlu0 %v590, 8
      %v612 = vpop.permute.xlu0 %611
      %s613 = scalar_lea.vmem %s3, 6
      %v614 = vld [vmem:[%s613] sm:$0x1]
      %v616 = vlaneseq
      %v617 = vshrl.u32 %v616, 7
      %v618 = vsub.s32 0, %v617
      %v619 = vrot.slane %v614, %v618
      %v621 = vmul.f32 %v610, %v619
      %v622 = vmul.f32 %v612, %v619
      %v623 = vadd.f32 %v607, %v621
      %v624 = vadd.f32 %v608, %v622
      %s625 = scalar_lea.vmem %s3, 7
      %v626 = vld [vmem:[%s625] sm:$0x1]
      %v628 = vlaneseq
      %v629 = vshrl.u32 %v628, 7
      %v630 = vsub.s32 0, %v629
      %v631 = vrot.slane %v626, %v630
      %v633 = vmul.f32 %v506, %v631
      %v634 = vmul.f32 %v502, %v631
      %v635 = vmul.f32 %v507, %v631
      %v639 = vrot.slane %v633, 1
      %v640 = vrot.slane %v634, 1
      %v641 = vsel %vm585, %v639, %v640
      %v642 = vrot.slane %v635, 1
      %v643 = vsel %vm585, %v640, %v642
      %v646 = vadd.f32 %v623, %v641
      %v647 = vadd.f32 %v624, %v643
      %648 = vrot.lane.b32.xlu0 %v588, 120
      %v649 = vpop.permute.xlu0 %648
      %650 = vrot.lane.b32.xlu0 %v590, 120
      %v651 = vpop.permute.xlu0 %650
      %s652 = scalar_lea.vmem %s3, 8
      %v653 = vld [vmem:[%s652] sm:$0x1]
      %v655 = vlaneseq
      %v656 = vshrl.u32 %v655, 7
      %v657 = vsub.s32 0, %v656
      %v658 = vrot.slane %v653, %v657
      %v660 = vmul.f32 %v649, %v658
      %v661 = vmul.f32 %v651, %v658
      %v662 = vadd.f32 %v646, %v660
      %v663 = vadd.f32 %v647, %v661
      %664 = vrot.lane.b32.xlu0 %v588, 112
      %v665 = vpop.permute.xlu0 %664
      %666 = vrot.lane.b32.xlu0 %v590, 112
      %v667 = vpop.permute.xlu0 %666
      %s668 = scalar_lea.vmem %s3, 9
      %v669 = vld [vmem:[%s668] sm:$0x1]
      %v671 = vlaneseq
      %v672 = vshrl.u32 %v671, 7
      %v673 = vsub.s32 0, %v672
      %v674 = vrot.slane %v669, %v673
      %v676 = vmul.f32 %v665, %v674
      %v677 = vmul.f32 %v667, %v674
      %v678 = vadd.f32 %v662, %v676
      %v679 = vadd.f32 %v663, %v677
      %680 = vrot.lane.b32.xlu0 %v493, 16
      %v681 = vpop.permute.xlu0 %680
      %682 = vrot.lane.b32.xlu0 %v494, 16
      %v683 = vpop.permute.xlu0 %682
      %s684 = scalar_lea.vmem %s3, 10
      %v685 = vld [vmem:[%s684] sm:$0x1]
      %v687 = vlaneseq
      %v688 = vshrl.u32 %v687, 7
      %v689 = vsub.s32 0, %v688
      %v690 = vrot.slane %v685, %v689
      %v692 = vmul.f32 %v681, %v690
      %v693 = vmul.f32 %v683, %v690
      %v694 = vadd.f32 %v678, %v692
      %v695 = vadd.f32 %v679, %v693
      %696 = vrot.lane.b32.xlu0 %v493, 8
      %v697 = vpop.permute.xlu0 %696
      %698 = vrot.lane.b32.xlu0 %v494, 8
      %v699 = vpop.permute.xlu0 %698
      %s700 = scalar_lea.vmem %s3, 11
      %v701 = vld [vmem:[%s700] sm:$0x1]
      %v703 = vlaneseq
      %v704 = vshrl.u32 %v703, 7
      %v705 = vsub.s32 0, %v704
      %v706 = vrot.slane %v701, %v705
      %v708 = vmul.f32 %v697, %v706
      %v709 = vmul.f32 %v699, %v706
      %v710 = vadd.f32 %v694, %v708
      %v711 = vadd.f32 %v695, %v709
      %s712 = scalar_lea.vmem %s3, 12
      %v713 = vld [vmem:[%s712] sm:$0x1]
      %v715 = vlaneseq
      %v716 = vshrl.u32 %v715, 7
      %v717 = vsub.s32 0, %v716
      %v718 = vrot.slane %v713, %v717
      %v720 = vmul.f32 %v493, %v718
      %v721 = vmul.f32 %v494, %v718
      %v722 = vadd.f32 %v710, %v720
      %v723 = vadd.f32 %v711, %v721
      %724 = vrot.lane.b32.xlu0 %v493, 120
      %v725 = vpop.permute.xlu0 %724
      %726 = vrot.lane.b32.xlu0 %v494, 120
      %v727 = vpop.permute.xlu0 %726
      %s728 = scalar_lea.vmem %s3, 13
      %v729 = vld [vmem:[%s728] sm:$0x1]
      %v731 = vlaneseq
      %v732 = vshrl.u32 %v731, 7
      %v733 = vsub.s32 0, %v732
      %v734 = vrot.slane %v729, %v733
      %v736 = vmul.f32 %v725, %v734
      %v737 = vmul.f32 %v727, %v734
      %v738 = vadd.f32 %v722, %v736
      %v739 = vadd.f32 %v723, %v737
      %740 = vrot.lane.b32.xlu0 %v493, 112
      %v741 = vpop.permute.xlu0 %740
      %742 = vrot.lane.b32.xlu0 %v494, 112
      %v743 = vpop.permute.xlu0 %742
      %s744 = scalar_lea.vmem %s3, 14
      %v745 = vld [vmem:[%s744] sm:$0x1]
      %v747 = vlaneseq
      %v748 = vshrl.u32 %v747, 7
      %v749 = vsub.s32 0, %v748
      %v750 = vrot.slane %v745, %v749
      %v752 = vmul.f32 %v741, %v750
      %v753 = vmul.f32 %v743, %v750
      %v754 = vadd.f32 %v738, %v752
      %v755 = vadd.f32 %v739, %v753
      %vm756 = vcmask 1044480
      %v757 = vrot.slane %v506, 3
      %v758 = vrot.slane %v502, 3
      %v759 = vsel %vm756, %v757, %v758
      %v760 = vrot.slane %v507, 3
      %v761 = vsel %vm756, %v758, %v760
      %764 = vrot.lane.b32.xlu0 %v759, 16
      %v765 = vpop.permute.xlu0 %764
      %766 = vrot.lane.b32.xlu0 %v761, 16
      %v767 = vpop.permute.xlu0 %766
      %s768 = scalar_lea.vmem %s3, 15
      %v769 = vld [vmem:[%s768] sm:$0x1]
      %v771 = vlaneseq
      %v772 = vshrl.u32 %v771, 7
      %v773 = vsub.s32 0, %v772
      %v774 = vrot.slane %v769, %v773
      %v776 = vmul.f32 %v765, %v774
      %v777 = vmul.f32 %v767, %v774
      %v778 = vadd.f32 %v754, %v776
      %v779 = vadd.f32 %v755, %v777
      %780 = vrot.lane.b32.xlu0 %v759, 8
      %v781 = vpop.permute.xlu0 %780
      %782 = vrot.lane.b32.xlu0 %v761, 8
      %v783 = vpop.permute.xlu0 %782
      %s784 = scalar_lea.vmem %s3, 16
      %v785 = vld [vmem:[%s784] sm:$0x1]
      %v787 = vlaneseq
      %v788 = vshrl.u32 %v787, 7
      %v789 = vsub.s32 0, %v788
      %v790 = vrot.slane %v785, %v789
      %v792 = vmul.f32 %v781, %v790
      %v793 = vmul.f32 %v783, %v790
      %v794 = vadd.f32 %v778, %v792
      %v795 = vadd.f32 %v779, %v793
      %s796 = scalar_lea.vmem %s3, 17
      %v797 = vld [vmem:[%s796] sm:$0x1]
      %v799 = vlaneseq
      %v800 = vshrl.u32 %v799, 7
      %v801 = vsub.s32 0, %v800
      %v802 = vrot.slane %v797, %v801
      %v804 = vmul.f32 %v506, %v802
      %v805 = vmul.f32 %v502, %v802
      %v806 = vmul.f32 %v507, %v802
      %v810 = vrot.slane %v804, 3
      %v811 = vrot.slane %v805, 3
      %v812 = vsel %vm756, %v810, %v811
      %v813 = vrot.slane %v806, 3
      %v814 = vsel %vm756, %v811, %v813
      %v817 = vadd.f32 %v794, %v812
      %v818 = vadd.f32 %v795, %v814
      %819 = vrot.lane.b32.xlu0 %v759, 120
      %v820 = vpop.permute.xlu0 %819
      %821 = vrot.lane.b32.xlu0 %v761, 120
      %v822 = vpop.permute.xlu0 %821
      %s823 = scalar_lea.vmem %s3, 18
      %v824 = vld [vmem:[%s823] sm:$0x1]
      %v826 = vlaneseq
      %v827 = vshrl.u32 %v826, 7
      %v828 = vsub.s32 0, %v827
      %v829 = vrot.slane %v824, %v828
      %v831 = vmul.f32 %v820, %v829
      %v832 = vmul.f32 %v822, %v829
      %v833 = vadd.f32 %v817, %v831
      %v834 = vadd.f32 %v818, %v832
      %835 = vrot.lane.b32.xlu0 %v759, 112
      %v836 = vpop.permute.xlu0 %835
      %837 = vrot.lane.b32.xlu0 %v761, 112
      %v838 = vpop.permute.xlu0 %837
      %s839 = scalar_lea.vmem %s3, 19
      %v840 = vld [vmem:[%s839] sm:$0x1]
      %v842 = vlaneseq
      %v843 = vshrl.u32 %v842, 7
      %v844 = vsub.s32 0, %v843
      %v845 = vrot.slane %v840, %v844
      %v847 = vmul.f32 %v836, %v845
      %v848 = vmul.f32 %v838, %v845
      %v849 = vadd.f32 %v833, %v847
      %v850 = vadd.f32 %v834, %v848
      %vm851 = vcmask 1043456
      %v852 = vrot.slane %v506, 4
      %v853 = vrot.slane %v502, 4
      %v854 = vsel %vm851, %v852, %v853
      %v855 = vrot.slane %v507, 4
      %v856 = vsel %vm851, %v853, %v855
      %859 = vrot.lane.b32.xlu0 %v854, 16
      %v860 = vpop.permute.xlu0 %859
      %861 = vrot.lane.b32.xlu0 %v856, 16
      %v862 = vpop.permute.xlu0 %861
      %s863 = scalar_lea.vmem %s3, 20
      %v864 = vld [vmem:[%s863] sm:$0x1]
      %v866 = vlaneseq
      %v867 = vshrl.u32 %v866, 7
      %v868 = vsub.s32 0, %v867
      %v869 = vrot.slane %v864, %v868
      %v871 = vmul.f32 %v860, %v869
      %v872 = vmul.f32 %v862, %v869
      %v873 = vadd.f32 %v849, %v871
      %v874 = vadd.f32 %v850, %v872
      %875 = vrot.lane.b32.xlu0 %v854, 8
      %v876 = vpop.permute.xlu0 %875
      %877 = vrot.lane.b32.xlu0 %v856, 8
      %v878 = vpop.permute.xlu0 %877
      %s879 = scalar_lea.vmem %s3, 21
      %v880 = vld [vmem:[%s879] sm:$0x1]
      %v882 = vlaneseq
      %v883 = vshrl.u32 %v882, 7
      %v884 = vsub.s32 0, %v883
      %v885 = vrot.slane %v880, %v884
      %v887 = vmul.f32 %v876, %v885
      %v888 = vmul.f32 %v878, %v885
      %v889 = vadd.f32 %v873, %v887
      %v890 = vadd.f32 %v874, %v888
      %s891 = scalar_lea.vmem %s3, 22
      %v892 = vld [vmem:[%s891] sm:$0x1]
      %v894 = vlaneseq
      %v895 = vshrl.u32 %v894, 7
      %v896 = vsub.s32 0, %v895
      %v897 = vrot.slane %v892, %v896
      %v899 = vmul.f32 %v506, %v897
      %v900 = vmul.f32 %v502, %v897
      %v901 = vmul.f32 %v507, %v897
      %v905 = vrot.slane %v899, 4
      %v906 = vrot.slane %v900, 4
      %v907 = vsel %vm851, %v905, %v906
      %v908 = vrot.slane %v901, 4
      %v909 = vsel %vm851, %v906, %v908
      %v912 = vadd.f32 %v889, %v907
      %v913 = vadd.f32 %v890, %v909
      %914 = vrot.lane.b32.xlu0 %v854, 120
      %v915 = vpop.permute.xlu0 %914
      %916 = vrot.lane.b32.xlu0 %v856, 120
      %v917 = vpop.permute.xlu0 %916
      %s918 = scalar_lea.vmem %s3, 23
      %v919 = vld [vmem:[%s918] sm:$0x1]
      %v921 = vlaneseq
      %v922 = vshrl.u32 %v921, 7
      %v923 = vsub.s32 0, %v922
      %v924 = vrot.slane %v919, %v923
      %v926 = vmul.f32 %v915, %v924
      %v927 = vmul.f32 %v917, %v924
      %v928 = vadd.f32 %v912, %v926
      %v929 = vadd.f32 %v913, %v927
      %930 = vrot.lane.b32.xlu0 %v854, 112
      %v931 = vpop.permute.xlu0 %930
      %932 = vrot.lane.b32.xlu0 %v856, 112
      %v933 = vpop.permute.xlu0 %932
      %s934 = scalar_lea.vmem %s3, 24
      %v935 = vld [vmem:[%s934] sm:$0x1]
      %v937 = vlaneseq
      %v938 = vshrl.u32 %v937, 7
      %v939 = vsub.s32 0, %v938
      %v940 = vrot.slane %v935, %v939
      %v942 = vmul.f32 %v931, %v940
      %v943 = vmul.f32 %v933, %v940
      %v944 = vadd.f32 %v928, %v942
      %v945 = vadd.f32 %v929, %v943
      %v946 = vld [vmem:[%s4] sm:$0x1]
      %v948 = vlaneseq
      %v949 = vshrl.u32 %v948, 7
      %v950 = vsub.s32 0, %v949
      %v951 = vrot.slane %v946, %v950
      %v953 = vadd.f32 %v944, %v951
      %v954 = vadd.f32 %v945, %v951
      %v955 = vmin.f32 %v953, 20.0
      %v956 = vmin.f32 %v954, 20.0
      %v957 = vmul.f32 %v955, 1.442695
      %v958 = vpow.pop %v957
      %v959 = vmul.f32 %v956, 1.442695
      %v960 = vpow.pop %v959
      %v961 = vadd.f32 %v958, 2.0
      %v962 = vadd.f32 %v960, 2.0
      %v963 = vmul.f32 %v958, %v961
      %v964 = vmul.f32 %v960, %v962
      %v965 = vadd.f32 %v963, 2.0
      %v966 = vadd.f32 %v964, 2.0
      %v967 = vrcp.pop %v965
      %v968 = vrcp.pop %v966
      %v969 = vmul.f32 %v965, %v967
      %v970 = vmul.f32 %v966, %v968
      %v971 = vsub.f32 2.0, %v969
      %v972 = vsub.f32 2.0, %v970
      %v973 = vmul.f32 %v967, %v971
      %v974 = vmul.f32 %v968, %v972
      %v975 = vmul.f32 %v963, %v973
      %v976 = vmul.f32 %v964, %v974
      %v977 = vmul.f32 %v953, %v975
      %v978 = vmul.f32 %v954, %v976
      %s979 = scalar_lea.vmem %s224, 16
      %980 = vst [vmem:[%s979] sm:$0xff] %v977
      %981 = vst [vmem:[%s979 + $0x8] sm:$0xff] %v978
      %p982 = scmp.lt.s32.totalorder %s16, 1
      %s983 = scalar_select %p982, %s16, 1
      %s984 = smul.addr %s983, 4
      %s985 = smul.addr %s984, 8
      %s986 = scalar_lea.vmem %s5, %s985
      // Predicated region
      $region41: #{ghostconv.1} parent=39 // pred_check
        %p987 = pneg %p144
      $region42: #{ghostconv.1} parent=39 // pred_check_branch
        %989 = sbr.rel (%p987) target = $region44
      $region43: #{ghostconv.1} parent=39 // pred_region
        _
      $region44: #{ghostconv.1} parent=39 // pred_fallthru
        _
    $region40: #{ghostconv.1} parent=5 // pred_fallthru
      _
    %p990 = scmp.le.s32.totalorder 2, %s11
    // Predicated region
    $region45: #{ghostconv.1} parent=5 // pred_check
      %p991 = pneg %p990
    $region46: #{ghostconv.1} parent=5 // pred_check_branch
      %993 = sbr.rel (%p991) target = $region48
    $region47: #{ghostconv.1} parent=5 // pred_region
      %s994 = ssub.s32 %s11, 2
      // Predicated region
      $region49: #{ghostconv.1} parent=47 // pred_check
        %p995 = pneg %p150
      $region50: #{ghostconv.1} parent=47 // pred_check_branch
        %997 = sbr.rel (%p995) target = $region52
      $region51: #{ghostconv.1} parent=47 // pred_region
        %p998 = scmp.lt.s32.totalorder %s17, 1
        %s999 = scalar_select %p998, %s17, 1
        %s1000 = smul.addr %s999, 4
        %s1001 = smul.addr %s1000, 8
        %s1002 = scalar_lea.vmem %s5, %s1001
      $region52: #{ghostconv.1} parent=47 // pred_fallthru
        _
    $region48: #{ghostconv.1} parent=5 // pred_fallthru
      _
  $region6: #{ghostconv.1} parent=0 // loop_footer
    %s15 = sadd.s32 1, %s11
  $region7: #{ghostconv.1} parent=0 // loop_footer_branch
    %10 = sbr.rel target = $region3
  $region8: #{ghostconv.1} parent=0 // loop_exit
    _

</llo_original>
